<compile_context>
chip_gen: v7x
topology: tpu7x:2x2x1
jax: 0.10.0
libtpu: 0.0.40
codegen_flags: <defaults>
</compile_context>

<pallas_src>
import functools

import jax
import jax.numpy as jnp
import numpy as np
from jax.experimental import pallas as pl
from jax.experimental.pallas import tpu as pltpu


def basic_block_kernel(x_ref, mask_ref, w1_ref, b1_ref, w2_ref, b2_ref, o_ref,
                       slab_ref, *, wp, npix_pad, split_k):
    """One image per grid step.

    x_ref:    (1, C, npix_pad) bf16  spatially zero-padded image, flattened
                                     (Hp*Wp) pixel axis, lane-padded to 128.
    mask_ref: (1, npix_pad)    f32   1.0 at real (interior) pixels, else 0.0.
    w*_ref:   (C, 9C)          bf16  conv weights, tap-major K, BN scale folded.
    b*_ref:   (C, 1)           f32   folded BN bias.
    o_ref:    (1, C, npix_pad) bf16  output slab, border ring zeroed (directly
                                     usable as the next block's x_ref).
    slab_ref: (C, EW2)         bf16  persistent VMEM scratch: halo'd conv input.
    """
    lpad = wp + 1                              # largest |tap offset| on flat axis
    C = w1_ref.shape[0]
    ew = slab_ref.shape[1]
    offs = [(ky - 1) * wp + (kx - 1) for ky in range(3) for kx in range(3)]

    # Re-zero the halo strips every step (tiny stores): keeps each grid step
    # self-contained, so "parallel" sharding across TensorCores stays correct.
    slab_ref[:, :lpad] = jnp.zeros((C, lpad), jnp.bfloat16)
    slab_ref[:, lpad + npix_pad:] = jnp.zeros((C, ew - lpad - npix_pad),
                                              jnp.bfloat16)

    # Place the padded image into the halo'd slab (interior fully overwritten).
    slab_ref[:, lpad:lpad + npix_pad] = x_ref[0]

    mask = mask_ref[...]                       # (1, npix_pad) f32

    def conv3x3(w_ref):
        if split_k:
            # 9 accumulated K=C matmuls straight off the slab (no tap-concat
            # store/reload); preferred on v6e/v7x once K=C fills the MXU depth.
            acc = jnp.zeros((C, npix_pad), jnp.float32)
            for t, o in enumerate(offs):
                tap = slab_ref[:, lpad + o: lpad + o + npix_pad]
                acc = acc + jnp.dot(w_ref[:, t * C:(t + 1) * C], tap,
                                    preferred_element_type=jnp.float32)
            return acc
        # Single MXU matmul with K = 9C (small C / v5e: keeps the MXU fed).
        taps = [slab_ref[:, lpad + o: lpad + o + npix_pad] for o in offs]
        kcat = jnp.concatenate(taps, axis=0)   # (9C, npix_pad) bf16
        return jnp.dot(w_ref[...], kcat, preferred_element_type=jnp.float32)

    # conv1 -> bn1 (scale folded into w1) -> relu; zero border ring + lane tail
    # (exactly the zero padding conv2 needs).
    mid = jnp.maximum(conv3x3(w1_ref) + b1_ref[...], 0.0) * mask

    # Reuse the same slab as conv2's halo'd input.
    slab_ref[:, lpad:lpad + npix_pad] = mid.astype(jnp.bfloat16)

    # conv2 -> bn2 (scale folded) -> + identity (f32) -> relu; mask the ring so
    # the stored slab is a valid padded input for a following BasicBlock.
    resid = x_ref[0].astype(jnp.float32)
    out = jnp.maximum(conv3x3(w2_ref) + b2_ref[...] + resid, 0.0) * mask
    o_ref[0] = out.astype(o_ref.dtype)


def basic_block_forward(x_nchw, w1_oihw, bn1, w2_oihw, bn2, eps=1e-5):
    """BasicBlock forward (stride=1, downsample=None).  NCHW f32 in / out.

    BatchNorm runs in inference mode; its scale is folded into the bf16 conv
    weights, its bias stays f32.  Internally activations move as lane-dense
    bf16 (N, C, npix_pad) slabs; the final unflatten back to NCHW f32 is only
    for the reference comparison (chained blocks consume the slab directly).
    """
    N, C, H, W = x_nchw.shape
    Hp, Wp = H + 2, W + 2
    npix = Hp * Wp
    npix_pad = pl.cdiv(npix, 128) * 128            # lane-dense compute/store width
    lpad = Wp + 1
    ew2 = pl.cdiv(2 * lpad + npix_pad, 128) * 128  # halo'd slab width

    # Single fused preprocessing pass: f32 NCHW -> bf16, spatial zero-pad,
    # flatten (Hp,Wp), lane-pad to npix_pad (pad/cast/reshape/pad fuse in XLA).
    x_flat = jnp.pad(
        jnp.pad(x_nchw, ((0, 0), (0, 0), (1, 1), (1, 1)))
        .astype(jnp.bfloat16).reshape(N, C, npix),
        ((0, 0), (0, 0), (0, npix_pad - npix)))

    # Interior (real-pixel) mask over the lane-padded flattened padded grid.
    pix = jnp.arange(npix_pad)
    r, c = pix // Wp, pix % Wp
    mask = ((pix < npix) & (r >= 1) & (r <= H) & (c >= 1) & (c <= W))
    mask = mask.astype(jnp.float32).reshape(1, npix_pad)

    def fold(w, bn):
        gamma, beta, mean, var = bn
        scale = gamma.astype(jnp.float32) / jnp.sqrt(var.astype(jnp.float32) + eps)
        bias = beta.astype(jnp.float32) - mean.astype(jnp.float32) * scale
        # (Cout, Cin, 3, 3) -> (Cout, ky, kx, Cin) -> (Cout, 9*Cin); BN scale
        # folded along Cout; bf16 for the MXU.
        wcat = jnp.transpose(w.astype(jnp.float32), (0, 2, 3, 1)).reshape(C, 9 * C)
        return (wcat * scale[:, None]).astype(jnp.bfloat16), bias.reshape(C, 1)

    w1c, b1 = fold(w1_oihw, bn1)
    w2c, b2 = fold(w2_oihw, bn2)

    split_k = C >= 256   # K=9C concat for small C (and v5e); split for large C
    kernel = functools.partial(basic_block_kernel, wp=Wp, npix_pad=npix_pad,
                               split_k=split_k)

    # Explicit VMEM budget: double-buffered activation blocks, single-buffered
    # constants, the halo'd slab scratch and in-kernel temporaries (tap concat
    # + f32 accumulators), with 2x headroom, capped to fit v7x (64 MiB/TC).
    act = C * npix_pad * 2
    bytes_per_step = (
        2 * act + 2 * act                             # x / out blocks (x2 buffers)
        + npix_pad * 4                                # mask
        + 2 * 9 * C * C * 2 + 2 * C * 4               # weights + biases
        + C * ew2 * 2                                 # halo'd slab scratch
        + (0 if split_k else 9 * C * npix_pad * 2)    # tap-concat temporary
        + 4 * C * npix_pad * 4)                       # f32 acc / mid / out / resid
    try:
        vmem_phys = pltpu.get_tpu_info().vmem_capacity_bytes
    except Exception:   # be conservative if the query is unavailable
        vmem_phys = 64 * 2 ** 20
    vmem_cap = min(48 * 2 ** 20, (3 * vmem_phys) // 4)
    vmem_limit = int(min(vmem_cap, max(16 * 2 ** 20, 2 * bytes_per_step)))

    def build(single_buffer_consts):
        ckw = dict(pipeline_mode=pl.Buffered(1)) if single_buffer_consts else {}
        return pl.pallas_call(
            kernel,
            out_shape=jax.ShapeDtypeStruct((N, C, npix_pad), jnp.bfloat16),
            grid=(N,),
            in_specs=[
                pl.BlockSpec((1, C, npix_pad), lambda n: (n, 0, 0)),
                pl.BlockSpec((1, npix_pad), lambda n: (0, 0), **ckw),
                pl.BlockSpec((C, 9 * C), lambda n: (0, 0), **ckw),
                pl.BlockSpec((C, 1), lambda n: (0, 0), **ckw),
                pl.BlockSpec((C, 9 * C), lambda n: (0, 0), **ckw),
                pl.BlockSpec((C, 1), lambda n: (0, 0), **ckw),
            ],
            out_specs=pl.BlockSpec((1, C, npix_pad), lambda n: (n, 0, 0)),
            scratch_shapes=[pltpu.VMEM((C, ew2), jnp.bfloat16)],
            compiler_params=pltpu.CompilerParams(
                dimension_semantics=("parallel",),
                vmem_limit_bytes=vmem_limit),
        )

    # Constants never change across the grid -> single-buffer them to save
    # VMEM (matters at large C / on v7x).  Fall back to default buffering if
    # this jax build does not honor pipeline_mode on BlockSpec.
    try:
        out = build(True)(x_flat, mask, w1c, b1, w2c, b2)
    except Exception:
        out = build(False)(x_flat, mask, w1c, b1, w2c, b2)

    # Test-only postprocessing back to NCHW f32.  Chained blocks would consume
    # `out` directly as their (N, C, npix_pad) bf16 input slab (its border
    # ring is already zeroed).
    return (out[:, :, :npix].reshape(N, C, Hp, Wp)[:, :, 1:H + 1, 1:W + 1]
            .astype(jnp.float32))


def ref_forward(x, w1, bn1, w2, bn2, eps=1e-5):
    """Pure-JAX f32 reference (lax.conv) for correctness checking."""
    def conv(x, w):
        return jax.lax.conv_general_dilated(
            x, w, (1, 1), ((1, 1), (1, 1)),
            dimension_numbers=("NCHW", "OIHW", "NCHW"))

    def bn(x, p):
        g, b, m, v = [t[None, :, None, None] for t in p]
        return (x - m) / jnp.sqrt(v + eps) * g + b

    out = jax.nn.relu(bn(conv(x, w1), bn1))
    out = bn(conv(out, w2), bn2)
    return jax.nn.relu(out + x)


if __name__ == "__main__":
    N, C, H, W = 2, 4, 16, 16  # inplanes = planes = 4, stride = 1
    key = jax.random.PRNGKey(0)
    ks = jax.random.split(key, 10)

    x = jax.random.normal(ks[0], (N, C, H, W), jnp.float32)
    w1 = jax.random.normal(ks[1], (C, C, 3, 3), jnp.float32) * 0.1
    w2 = jax.random.normal(ks[2], (C, C, 3, 3), jnp.float32) * 0.1
    bn1 = (jax.random.uniform(ks[3], (C,), minval=0.5, maxval=1.5),  # gamma
           jax.random.normal(ks[4], (C,)) * 0.1,                     # beta
           jax.random.normal(ks[5], (C,)) * 0.1,                     # running_mean
           jax.random.uniform(ks[6], (C,), minval=0.5, maxval=1.5))  # running_var
    bn2 = (jax.random.uniform(ks[7], (C,), minval=0.5, maxval=1.5),
           jax.random.normal(ks[8], (C,)) * 0.1,
           jax.random.normal(ks[9], (C,)) * 0.1,
           jax.random.uniform(ks[6], (C,), minval=0.5, maxval=1.5))

    out = jax.block_until_ready(basic_block_forward(x, w1, bn1, w2, bn2))
    ref = jax.block_until_ready(ref_forward(x, w1, bn1, w2, bn2))

    # Tolerance reflects bf16 matmul operands / bf16 activation I/O
    # (f32 accumulation and epilogue inside the kernel).
    np.testing.assert_allclose(np.asarray(out), np.asarray(ref),
                               atol=5e-2, rtol=5e-2)
    print("KERNEL_OK")
</pallas_src>

<mosaic_0001>
module attributes {stable_mosaic.version = 11 : i64} {
  func.func @basic_block_kernel(%arg0: i32, %arg1: memref<1x4x384xbf16, #tpu.memory_space<vmem>>, %arg2: memref<1x384xf32, #tpu.memory_space<vmem>>, %arg3: memref<4x36xbf16, #tpu.memory_space<vmem>>, %arg4: memref<4x1xf32, #tpu.memory_space<vmem>>, %arg5: memref<4x36xbf16, #tpu.memory_space<vmem>>, %arg6: memref<4x1xf32, #tpu.memory_space<vmem>>, %arg7: memref<1x4x384xbf16, #tpu.memory_space<vmem>>, %arg8: memref<4x512xbf16, #tpu.memory_space<vmem>>) attributes {dimension_semantics = [#tpu.dimension_semantics<parallel>], iteration_bounds = array<i64: 2>, scalar_prefetch = 0 : i64, scratch_operands = 1 : i64, tpu.core_type = #tpu.core_type<tc>, window_params = [{transform_indices = @transform_0, window_bounds = array<i64: 1, 4, 384>}, {pipeline_mode = #tpu.pipeline_mode<synchronous>, transform_indices = @transform_1, window_bounds = array<i64: 1, 384>}, {pipeline_mode = #tpu.pipeline_mode<synchronous>, transform_indices = @transform_2, window_bounds = array<i64: 4, 36>}, {pipeline_mode = #tpu.pipeline_mode<synchronous>, transform_indices = @transform_3, window_bounds = array<i64: 4, 1>}, {pipeline_mode = #tpu.pipeline_mode<synchronous>, transform_indices = @transform_4, window_bounds = array<i64: 4, 36>}, {pipeline_mode = #tpu.pipeline_mode<synchronous>, transform_indices = @transform_5, window_bounds = array<i64: 4, 1>}, {transform_indices = @transform_6, window_bounds = array<i64: 1, 4, 384>}]} {
    %cst = arith.constant 0.000000e+00 : bf16
    %0 = vector.broadcast %cst : bf16 to vector<4x19xbf16>
    %c0 = arith.constant 0 : index
    %c0_0 = arith.constant 0 : index
    %1 = vector.load %arg8[%c0, %c0_0] : memref<4x512xbf16, #tpu.memory_space<vmem>>, vector<4x19xbf16>
    tpu.vector_store %arg8[%c0, %c0_0], %0 {strides = array<i32>} : memref<4x512xbf16, #tpu.memory_space<vmem>>, vector<4x19xbf16>,
    %cst_1 = arith.constant 0.000000e+00 : bf16
    %2 = vector.broadcast %cst_1 : bf16 to vector<4x109xbf16>
    %c0_2 = arith.constant 0 : index
    %c403 = arith.constant 403 : index
    %3 = vector.load %arg8[%c0_2, %c403] : memref<4x512xbf16, #tpu.memory_space<vmem>>, vector<4x109xbf16>
    tpu.vector_store %arg8[%c0_2, %c403], %2 {strides = array<i32>} : memref<4x512xbf16, #tpu.memory_space<vmem>>, vector<4x109xbf16>,
    %c0_3 = arith.constant 0 : index
    %c0_4 = arith.constant 0 : index
    %c0_5 = arith.constant 0 : index
    %4 = vector.load %arg1[%c0_3, %c0_4, %c0_5] : memref<1x4x384xbf16, #tpu.memory_space<vmem>>, vector<1x4x384xbf16>
    %5 = vector.shape_cast %4 : vector<1x4x384xbf16> to vector<4x384xbf16>
    %c0_6 = arith.constant 0 : index
    %c19 = arith.constant 19 : index
    %6 = vector.load %arg8[%c0_6, %c19] : memref<4x512xbf16, #tpu.memory_space<vmem>>, vector<4x384xbf16>
    tpu.vector_store %arg8[%c0_6, %c19], %5 {strides = array<i32>} : memref<4x512xbf16, #tpu.memory_space<vmem>>, vector<4x384xbf16>,
    %c0_7 = arith.constant 0 : index
    %c0_8 = arith.constant 0 : index
    %7 = vector.load %arg2[%c0_7, %c0_8] : memref<1x384xf32, #tpu.memory_space<vmem>>, vector<1x384xf32>
    %c0_9 = arith.constant 0 : index
    %c0_10 = arith.constant 0 : index
    %8 = vector.load %arg8[%c0_9, %c0_10] : memref<4x512xbf16, #tpu.memory_space<vmem>>, vector<4x384xbf16>
    %c0_11 = arith.constant 0 : index
    %c1 = arith.constant 1 : index
    %9 = vector.load %arg8[%c0_11, %c1] : memref<4x512xbf16, #tpu.memory_space<vmem>>, vector<4x384xbf16>
    %c0_12 = arith.constant 0 : index
    %c2 = arith.constant 2 : index
    %10 = vector.load %arg8[%c0_12, %c2] : memref<4x512xbf16, #tpu.memory_space<vmem>>, vector<4x384xbf16>
    %c0_13 = arith.constant 0 : index
    %c18 = arith.constant 18 : index
    %11 = vector.load %arg8[%c0_13, %c18] : memref<4x512xbf16, #tpu.memory_space<vmem>>, vector<4x384xbf16>
    %c0_14 = arith.constant 0 : index
    %c19_15 = arith.constant 19 : index
    %12 = vector.load %arg8[%c0_14, %c19_15] : memref<4x512xbf16, #tpu.memory_space<vmem>>, vector<4x384xbf16>
    %c0_16 = arith.constant 0 : index
    %c20 = arith.constant 20 : index
    %13 = vector.load %arg8[%c0_16, %c20] : memref<4x512xbf16, #tpu.memory_space<vmem>>, vector<4x384xbf16>
    %c0_17 = arith.constant 0 : index
    %c36 = arith.constant 36 : index
    %14 = vector.load %arg8[%c0_17, %c36] : memref<4x512xbf16, #tpu.memory_space<vmem>>, vector<4x384xbf16>
    %c0_18 = arith.constant 0 : index
    %c37 = arith.constant 37 : index
    %15 = vector.load %arg8[%c0_18, %c37] : memref<4x512xbf16, #tpu.memory_space<vmem>>, vector<4x384xbf16>
    %c0_19 = arith.constant 0 : index
    %c38 = arith.constant 38 : index
    %16 = vector.load %arg8[%c0_19, %c38] : memref<4x512xbf16, #tpu.memory_space<vmem>>, vector<4x384xbf16>
    %17 = tpu.concatenate %8, %9, %10, %11, %12, %13, %14, %15, %16 in 0 : vector<4x384xbf16>, vector<4x384xbf16>, vector<4x384xbf16>, vector<4x384xbf16>, vector<4x384xbf16>, vector<4x384xbf16>, vector<4x384xbf16>, vector<4x384xbf16>, vector<4x384xbf16> -> vector<36x384xbf16>
    %c0_20 = arith.constant 0 : index
    %c0_21 = arith.constant 0 : index
    %18 = vector.load %arg3[%c0_20, %c0_21] : memref<4x36xbf16, #tpu.memory_space<vmem>>, vector<4x36xbf16>
    %cst_22 = arith.constant dense<0.000000e+00> : vector<4x384xf32>
    %19 = tpu.matmul %18, %17, %cst_22 {dimension_numbers = #tpu.dot_dimension_numbers<[1], [0], [0], [1], [0, 0, 1, 1], [], []>} : vector<4x36xbf16>, vector<36x384xbf16>, vector<4x384xf32> -> vector<4x384xf32>
    %c0_23 = arith.constant 0 : index
    %c0_24 = arith.constant 0 : index
    %20 = vector.load %arg4[%c0_23, %c0_24] : memref<4x1xf32, #tpu.memory_space<vmem>>, vector<4x1xf32>
    %21 = vector.broadcast %20 : vector<4x1xf32> to vector<4x384xf32>
    %22 = arith.addf %19, %21 : vector<4x384xf32>
    %cst_25 = arith.constant 0.000000e+00 : f32
    %23 = vector.broadcast %cst_25 : f32 to vector<4x384xf32>
    %24 = arith.maximumf %22, %23 : vector<4x384xf32>
    %25 = vector.broadcast %7 : vector<1x384xf32> to vector<4x384xf32>
    %26 = arith.mulf %24, %25 : vector<4x384xf32>
    %27 = arith.truncf %26 : vector<4x384xf32> to vector<4x384xbf16>
    %c0_26 = arith.constant 0 : index
    %c19_27 = arith.constant 19 : index
    %28 = vector.load %arg8[%c0_26, %c19_27] : memref<4x512xbf16, #tpu.memory_space<vmem>>, vector<4x384xbf16>
    tpu.vector_store %arg8[%c0_26, %c19_27], %27 {strides = array<i32>} : memref<4x512xbf16, #tpu.memory_space<vmem>>, vector<4x384xbf16>,
    %c0_28 = arith.constant 0 : index
    %c0_29 = arith.constant 0 : index
    %c0_30 = arith.constant 0 : index
    %29 = vector.load %arg1[%c0_28, %c0_29, %c0_30] : memref<1x4x384xbf16, #tpu.memory_space<vmem>>, vector<1x4x384xbf16>
    %30 = vector.shape_cast %29 : vector<1x4x384xbf16> to vector<4x384xbf16>
    %31 = arith.extf %30 : vector<4x384xbf16> to vector<4x384xf32>
    %c0_31 = arith.constant 0 : index
    %c0_32 = arith.constant 0 : index
    %32 = vector.load %arg8[%c0_31, %c0_32] : memref<4x512xbf16, #tpu.memory_space<vmem>>, vector<4x384xbf16>
    %c0_33 = arith.constant 0 : index
    %c1_34 = arith.constant 1 : index
    %33 = vector.load %arg8[%c0_33, %c1_34] : memref<4x512xbf16, #tpu.memory_space<vmem>>, vector<4x384xbf16>
    %c0_35 = arith.constant 0 : index
    %c2_36 = arith.constant 2 : index
    %34 = vector.load %arg8[%c0_35, %c2_36] : memref<4x512xbf16, #tpu.memory_space<vmem>>, vector<4x384xbf16>
    %c0_37 = arith.constant 0 : index
    %c18_38 = arith.constant 18 : index
    %35 = vector.load %arg8[%c0_37, %c18_38] : memref<4x512xbf16, #tpu.memory_space<vmem>>, vector<4x384xbf16>
    %c0_39 = arith.constant 0 : index
    %c19_40 = arith.constant 19 : index
    %36 = vector.load %arg8[%c0_39, %c19_40] : memref<4x512xbf16, #tpu.memory_space<vmem>>, vector<4x384xbf16>
    %c0_41 = arith.constant 0 : index
    %c20_42 = arith.constant 20 : index
    %37 = vector.load %arg8[%c0_41, %c20_42] : memref<4x512xbf16, #tpu.memory_space<vmem>>, vector<4x384xbf16>
    %c0_43 = arith.constant 0 : index
    %c36_44 = arith.constant 36 : index
    %38 = vector.load %arg8[%c0_43, %c36_44] : memref<4x512xbf16, #tpu.memory_space<vmem>>, vector<4x384xbf16>
    %c0_45 = arith.constant 0 : index
    %c37_46 = arith.constant 37 : index
    %39 = vector.load %arg8[%c0_45, %c37_46] : memref<4x512xbf16, #tpu.memory_space<vmem>>, vector<4x384xbf16>
    %c0_47 = arith.constant 0 : index
    %c38_48 = arith.constant 38 : index
    %40 = vector.load %arg8[%c0_47, %c38_48] : memref<4x512xbf16, #tpu.memory_space<vmem>>, vector<4x384xbf16>
    %41 = tpu.concatenate %32, %33, %34, %35, %36, %37, %38, %39, %40 in 0 : vector<4x384xbf16>, vector<4x384xbf16>, vector<4x384xbf16>, vector<4x384xbf16>, vector<4x384xbf16>, vector<4x384xbf16>, vector<4x384xbf16>, vector<4x384xbf16>, vector<4x384xbf16> -> vector<36x384xbf16>
    %c0_49 = arith.constant 0 : index
    %c0_50 = arith.constant 0 : index
    %42 = vector.load %arg5[%c0_49, %c0_50] : memref<4x36xbf16, #tpu.memory_space<vmem>>, vector<4x36xbf16>
    %cst_51 = arith.constant dense<0.000000e+00> : vector<4x384xf32>
    %43 = tpu.matmul %42, %41, %cst_51 {dimension_numbers = #tpu.dot_dimension_numbers<[1], [0], [0], [1], [0, 0, 1, 1], [], []>} : vector<4x36xbf16>, vector<36x384xbf16>, vector<4x384xf32> -> vector<4x384xf32>
    %c0_52 = arith.constant 0 : index
    %c0_53 = arith.constant 0 : index
    %44 = vector.load %arg6[%c0_52, %c0_53] : memref<4x1xf32, #tpu.memory_space<vmem>>, vector<4x1xf32>
    %45 = vector.broadcast %44 : vector<4x1xf32> to vector<4x384xf32>
    %46 = arith.addf %43, %45 : vector<4x384xf32>
    %47 = arith.addf %46, %31 : vector<4x384xf32>
    %cst_54 = arith.constant 0.000000e+00 : f32
    %48 = vector.broadcast %cst_54 : f32 to vector<4x384xf32>
    %49 = arith.maximumf %47, %48 : vector<4x384xf32>
    %50 = vector.broadcast %7 : vector<1x384xf32> to vector<4x384xf32>
    %51 = arith.mulf %49, %50 : vector<4x384xf32>
    %52 = arith.truncf %51 : vector<4x384xf32> to vector<4x384xbf16>
    %c0_55 = arith.constant 0 : index
    %c0_56 = arith.constant 0 : index
    %c0_57 = arith.constant 0 : index
    %53 = vector.load %arg7[%c0_55, %c0_56, %c0_57] : memref<1x4x384xbf16, #tpu.memory_space<vmem>>, vector<1x4x384xbf16>
    %54 = vector.shape_cast %53 : vector<1x4x384xbf16> to vector<4x384xbf16>
    %55 = vector.shape_cast %52 : vector<4x384xbf16> to vector<1x4x384xbf16>
    tpu.vector_store %arg7[%c0_55, %c0_56, %c0_57], %55 {strides = array<i32>} : memref<1x4x384xbf16, #tpu.memory_space<vmem>>, vector<1x4x384xbf16>,
    return
  }
  func.func @transform_0(%arg0: i32) -> (i32, i32, i32) {
    %c0_i32 = arith.constant 0 : i32
    %c0_i32_0 = arith.constant 0 : i32
    %c0_i32_1 = arith.constant 0 : i32
    return %arg0, %c0_i32, %c0_i32_0 : i32, i32, i32
  }
  func.func @transform_1(%arg0: i32) -> (i32, i32) {
    %c0_i32 = arith.constant 0 : i32
    %c0_i32_0 = arith.constant 0 : i32
    %c0_i32_1 = arith.constant 0 : i32
    return %c0_i32, %c0_i32_0 : i32, i32
  }
  func.func @transform_2(%arg0: i32) -> (i32, i32) {
    %c0_i32 = arith.constant 0 : i32
    %c0_i32_0 = arith.constant 0 : i32
    %c0_i32_1 = arith.constant 0 : i32
    return %c0_i32, %c0_i32_0 : i32, i32
  }
  func.func @transform_3(%arg0: i32) -> (i32, i32) {
    %c0_i32 = arith.constant 0 : i32
    %c0_i32_0 = arith.constant 0 : i32
    %c0_i32_1 = arith.constant 0 : i32
    return %c0_i32, %c0_i32_0 : i32, i32
  }
  func.func @transform_4(%arg0: i32) -> (i32, i32) {
    %c0_i32 = arith.constant 0 : i32
    %c0_i32_0 = arith.constant 0 : i32
    %c0_i32_1 = arith.constant 0 : i32
    return %c0_i32, %c0_i32_0 : i32, i32
  }
  func.func @transform_5(%arg0: i32) -> (i32, i32) {
    %c0_i32 = arith.constant 0 : i32
    %c0_i32_0 = arith.constant 0 : i32
    %c0_i32_1 = arith.constant 0 : i32
    return %c0_i32, %c0_i32_0 : i32, i32
  }
  func.func @transform_6(%arg0: i32) -> (i32, i32, i32) {
    %c0_i32 = arith.constant 0 : i32
    %c0_i32_0 = arith.constant 0 : i32
    %c0_i32_1 = arith.constant 0 : i32
    return %arg0, %c0_i32, %c0_i32_0 : i32, i32, i32
  }
}

module attributes {stable_mosaic.version = 11 : i64} {
  func.func @basic_block_kernel(%arg0: i32, %arg1: memref<1x4x384xbf16, #tpu.memory_space<vmem>>, %arg2: memref<1x384xf32, #tpu.memory_space<vmem>>, %arg3: memref<4x36xbf16, #tpu.memory_space<vmem>>, %arg4: memref<4x1xf32, #tpu.memory_space<vmem>>, %arg5: memref<4x36xbf16, #tpu.memory_space<vmem>>, %arg6: memref<4x1xf32, #tpu.memory_space<vmem>>, %arg7: memref<1x4x384xbf16, #tpu.memory_space<vmem>>, %arg8: memref<4x512xbf16, #tpu.memory_space<vmem>>) attributes {dimension_semantics = [#tpu.dimension_semantics<parallel>], iteration_bounds = array<i64: 2>, scalar_prefetch = 0 : i64, scratch_operands = 1 : i64, tpu.core_type = #tpu.core_type<tc>, window_params = [{transform_indices = @transform_0, window_bounds = array<i64: 1, 4, 384>}, {pipeline_mode = #tpu.pipeline_mode<synchronous>, transform_indices = @transform_1, window_bounds = array<i64: 1, 384>}, {pipeline_mode = #tpu.pipeline_mode<synchronous>, transform_indices = @transform_2, window_bounds = array<i64: 4, 36>}, {pipeline_mode = #tpu.pipeline_mode<synchronous>, transform_indices = @transform_3, window_bounds = array<i64: 4, 1>}, {pipeline_mode = #tpu.pipeline_mode<synchronous>, transform_indices = @transform_4, window_bounds = array<i64: 4, 36>}, {pipeline_mode = #tpu.pipeline_mode<synchronous>, transform_indices = @transform_5, window_bounds = array<i64: 4, 1>}, {transform_indices = @transform_6, window_bounds = array<i64: 1, 4, 384>}]} {
    %cst = arith.constant 0.000000e+00 : bf16
    %0 = vector.broadcast %cst : bf16 to vector<4x19xbf16>
    %c0 = arith.constant 0 : index
    %c0_0 = arith.constant 0 : index
    %1 = vector.load %arg8[%c0, %c0_0] : memref<4x512xbf16, #tpu.memory_space<vmem>>, vector<4x19xbf16>
    tpu.vector_store %arg8[%c0, %c0_0], %0 {strides = array<i32>} : memref<4x512xbf16, #tpu.memory_space<vmem>>, vector<4x19xbf16>,
    %cst_1 = arith.constant 0.000000e+00 : bf16
    %2 = vector.broadcast %cst_1 : bf16 to vector<4x109xbf16>
    %c0_2 = arith.constant 0 : index
    %c403 = arith.constant 403 : index
    %3 = vector.load %arg8[%c0_2, %c403] : memref<4x512xbf16, #tpu.memory_space<vmem>>, vector<4x109xbf16>
    tpu.vector_store %arg8[%c0_2, %c403], %2 {strides = array<i32>} : memref<4x512xbf16, #tpu.memory_space<vmem>>, vector<4x109xbf16>,
    %c0_3 = arith.constant 0 : index
    %c0_4 = arith.constant 0 : index
    %c0_5 = arith.constant 0 : index
    %4 = vector.load %arg1[%c0_3, %c0_4, %c0_5] : memref<1x4x384xbf16, #tpu.memory_space<vmem>>, vector<1x4x384xbf16>
    %5 = vector.shape_cast %4 : vector<1x4x384xbf16> to vector<4x384xbf16>
    %c0_6 = arith.constant 0 : index
    %c19 = arith.constant 19 : index
    %6 = vector.load %arg8[%c0_6, %c19] : memref<4x512xbf16, #tpu.memory_space<vmem>>, vector<4x384xbf16>
    tpu.vector_store %arg8[%c0_6, %c19], %5 {strides = array<i32>} : memref<4x512xbf16, #tpu.memory_space<vmem>>, vector<4x384xbf16>,
    %c0_7 = arith.constant 0 : index
    %c0_8 = arith.constant 0 : index
    %7 = vector.load %arg2[%c0_7, %c0_8] : memref<1x384xf32, #tpu.memory_space<vmem>>, vector<1x384xf32>
    %c0_9 = arith.constant 0 : index
    %c0_10 = arith.constant 0 : index
    %8 = vector.load %arg8[%c0_9, %c0_10] : memref<4x512xbf16, #tpu.memory_space<vmem>>, vector<4x384xbf16>
    %c0_11 = arith.constant 0 : index
    %c1 = arith.constant 1 : index
    %9 = vector.load %arg8[%c0_11, %c1] : memref<4x512xbf16, #tpu.memory_space<vmem>>, vector<4x384xbf16>
    %c0_12 = arith.constant 0 : index
    %c2 = arith.constant 2 : index
    %10 = vector.load %arg8[%c0_12, %c2] : memref<4x512xbf16, #tpu.memory_space<vmem>>, vector<4x384xbf16>
    %c0_13 = arith.constant 0 : index
    %c18 = arith.constant 18 : index
    %11 = vector.load %arg8[%c0_13, %c18] : memref<4x512xbf16, #tpu.memory_space<vmem>>, vector<4x384xbf16>
    %c0_14 = arith.constant 0 : index
    %c19_15 = arith.constant 19 : index
    %12 = vector.load %arg8[%c0_14, %c19_15] : memref<4x512xbf16, #tpu.memory_space<vmem>>, vector<4x384xbf16>
    %c0_16 = arith.constant 0 : index
    %c20 = arith.constant 20 : index
    %13 = vector.load %arg8[%c0_16, %c20] : memref<4x512xbf16, #tpu.memory_space<vmem>>, vector<4x384xbf16>
    %c0_17 = arith.constant 0 : index
    %c36 = arith.constant 36 : index
    %14 = vector.load %arg8[%c0_17, %c36] : memref<4x512xbf16, #tpu.memory_space<vmem>>, vector<4x384xbf16>
    %c0_18 = arith.constant 0 : index
    %c37 = arith.constant 37 : index
    %15 = vector.load %arg8[%c0_18, %c37] : memref<4x512xbf16, #tpu.memory_space<vmem>>, vector<4x384xbf16>
    %c0_19 = arith.constant 0 : index
    %c38 = arith.constant 38 : index
    %16 = vector.load %arg8[%c0_19, %c38] : memref<4x512xbf16, #tpu.memory_space<vmem>>, vector<4x384xbf16>
    %17 = tpu.concatenate %8, %9, %10, %11, %12, %13, %14, %15, %16 in 0 : vector<4x384xbf16>, vector<4x384xbf16>, vector<4x384xbf16>, vector<4x384xbf16>, vector<4x384xbf16>, vector<4x384xbf16>, vector<4x384xbf16>, vector<4x384xbf16>, vector<4x384xbf16> -> vector<36x384xbf16>
    %c0_20 = arith.constant 0 : index
    %c0_21 = arith.constant 0 : index
    %18 = vector.load %arg3[%c0_20, %c0_21] : memref<4x36xbf16, #tpu.memory_space<vmem>>, vector<4x36xbf16>
    %cst_22 = arith.constant dense<0.000000e+00> : vector<4x384xf32>
    %19 = tpu.matmul %18, %17, %cst_22 {dimension_numbers = #tpu.dot_dimension_numbers<[1], [0], [0], [1], [0, 0, 1, 1], [], []>} : vector<4x36xbf16>, vector<36x384xbf16>, vector<4x384xf32> -> vector<4x384xf32>
    %c0_23 = arith.constant 0 : index
    %c0_24 = arith.constant 0 : index
    %20 = vector.load %arg4[%c0_23, %c0_24] : memref<4x1xf32, #tpu.memory_space<vmem>>, vector<4x1xf32>
    %21 = vector.broadcast %20 : vector<4x1xf32> to vector<4x384xf32>
    %22 = arith.addf %19, %21 : vector<4x384xf32>
    %cst_25 = arith.constant 0.000000e+00 : f32
    %23 = vector.broadcast %cst_25 : f32 to vector<4x384xf32>
    %24 = arith.maximumf %22, %23 : vector<4x384xf32>
    %25 = vector.broadcast %7 : vector<1x384xf32> to vector<4x384xf32>
    %26 = arith.mulf %24, %25 : vector<4x384xf32>
    %27 = arith.truncf %26 : vector<4x384xf32> to vector<4x384xbf16>
    %c0_26 = arith.constant 0 : index
    %c19_27 = arith.constant 19 : index
    %28 = vector.load %arg8[%c0_26, %c19_27] : memref<4x512xbf16, #tpu.memory_space<vmem>>, vector<4x384xbf16>
    tpu.vector_store %arg8[%c0_26, %c19_27], %27 {strides = array<i32>} : memref<4x512xbf16, #tpu.memory_space<vmem>>, vector<4x384xbf16>,
    %c0_28 = arith.constant 0 : index
    %c0_29 = arith.constant 0 : index
    %c0_30 = arith.constant 0 : index
    %29 = vector.load %arg1[%c0_28, %c0_29, %c0_30] : memref<1x4x384xbf16, #tpu.memory_space<vmem>>, vector<1x4x384xbf16>
    %30 = vector.shape_cast %29 : vector<1x4x384xbf16> to vector<4x384xbf16>
    %31 = arith.extf %30 : vector<4x384xbf16> to vector<4x384xf32>
    %c0_31 = arith.constant 0 : index
    %c0_32 = arith.constant 0 : index
    %32 = vector.load %arg8[%c0_31, %c0_32] : memref<4x512xbf16, #tpu.memory_space<vmem>>, vector<4x384xbf16>
    %c0_33 = arith.constant 0 : index
    %c1_34 = arith.constant 1 : index
    %33 = vector.load %arg8[%c0_33, %c1_34] : memref<4x512xbf16, #tpu.memory_space<vmem>>, vector<4x384xbf16>
    %c0_35 = arith.constant 0 : index
    %c2_36 = arith.constant 2 : index
    %34 = vector.load %arg8[%c0_35, %c2_36] : memref<4x512xbf16, #tpu.memory_space<vmem>>, vector<4x384xbf16>
    %c0_37 = arith.constant 0 : index
    %c18_38 = arith.constant 18 : index
    %35 = vector.load %arg8[%c0_37, %c18_38] : memref<4x512xbf16, #tpu.memory_space<vmem>>, vector<4x384xbf16>
    %c0_39 = arith.constant 0 : index
    %c19_40 = arith.constant 19 : index
    %36 = vector.load %arg8[%c0_39, %c19_40] : memref<4x512xbf16, #tpu.memory_space<vmem>>, vector<4x384xbf16>
    %c0_41 = arith.constant 0 : index
    %c20_42 = arith.constant 20 : index
    %37 = vector.load %arg8[%c0_41, %c20_42] : memref<4x512xbf16, #tpu.memory_space<vmem>>, vector<4x384xbf16>
    %c0_43 = arith.constant 0 : index
    %c36_44 = arith.constant 36 : index
    %38 = vector.load %arg8[%c0_43, %c36_44] : memref<4x512xbf16, #tpu.memory_space<vmem>>, vector<4x384xbf16>
    %c0_45 = arith.constant 0 : index
    %c37_46 = arith.constant 37 : index
    %39 = vector.load %arg8[%c0_45, %c37_46] : memref<4x512xbf16, #tpu.memory_space<vmem>>, vector<4x384xbf16>
    %c0_47 = arith.constant 0 : index
    %c38_48 = arith.constant 38 : index
    %40 = vector.load %arg8[%c0_47, %c38_48] : memref<4x512xbf16, #tpu.memory_space<vmem>>, vector<4x384xbf16>
    %41 = tpu.concatenate %32, %33, %34, %35, %36, %37, %38, %39, %40 in 0 : vector<4x384xbf16>, vector<4x384xbf16>, vector<4x384xbf16>, vector<4x384xbf16>, vector<4x384xbf16>, vector<4x384xbf16>, vector<4x384xbf16>, vector<4x384xbf16>, vector<4x384xbf16> -> vector<36x384xbf16>
    %c0_49 = arith.constant 0 : index
    %c0_50 = arith.constant 0 : index
    %42 = vector.load %arg5[%c0_49, %c0_50] : memref<4x36xbf16, #tpu.memory_space<vmem>>, vector<4x36xbf16>
    %cst_51 = arith.constant dense<0.000000e+00> : vector<4x384xf32>
    %43 = tpu.matmul %42, %41, %cst_51 {dimension_numbers = #tpu.dot_dimension_numbers<[1], [0], [0], [1], [0, 0, 1, 1], [], []>} : vector<4x36xbf16>, vector<36x384xbf16>, vector<4x384xf32> -> vector<4x384xf32>
    %c0_52 = arith.constant 0 : index
    %c0_53 = arith.constant 0 : index
    %44 = vector.load %arg6[%c0_52, %c0_53] : memref<4x1xf32, #tpu.memory_space<vmem>>, vector<4x1xf32>
    %45 = vector.broadcast %44 : vector<4x1xf32> to vector<4x384xf32>
    %46 = arith.addf %43, %45 : vector<4x384xf32>
    %47 = arith.addf %46, %31 : vector<4x384xf32>
    %cst_54 = arith.constant 0.000000e+00 : f32
    %48 = vector.broadcast %cst_54 : f32 to vector<4x384xf32>
    %49 = arith.maximumf %47, %48 : vector<4x384xf32>
    %50 = vector.broadcast %7 : vector<1x384xf32> to vector<4x384xf32>
    %51 = arith.mulf %49, %50 : vector<4x384xf32>
    %52 = arith.truncf %51 : vector<4x384xf32> to vector<4x384xbf16>
    %c0_55 = arith.constant 0 : index
    %c0_56 = arith.constant 0 : index
    %c0_57 = arith.constant 0 : index
    %53 = vector.load %arg7[%c0_55, %c0_56, %c0_57] : memref<1x4x384xbf16, #tpu.memory_space<vmem>>, vector<1x4x384xbf16>
    %54 = vector.shape_cast %53 : vector<1x4x384xbf16> to vector<4x384xbf16>
    %55 = vector.shape_cast %52 : vector<4x384xbf16> to vector<1x4x384xbf16>
    tpu.vector_store %arg7[%c0_55, %c0_56, %c0_57], %55 {strides = array<i32>} : memref<1x4x384xbf16, #tpu.memory_space<vmem>>, vector<1x4x384xbf16>,
    return
  }
  func.func @transform_0(%arg0: i32) -> (i32, i32, i32) {
    %c0_i32 = arith.constant 0 : i32
    %c0_i32_0 = arith.constant 0 : i32
    %c0_i32_1 = arith.constant 0 : i32
    return %arg0, %c0_i32, %c0_i32_0 : i32, i32, i32
  }
  func.func @transform_1(%arg0: i32) -> (i32, i32) {
    %c0_i32 = arith.constant 0 : i32
    %c0_i32_0 = arith.constant 0 : i32
    %c0_i32_1 = arith.constant 0 : i32
    return %c0_i32, %c0_i32_0 : i32, i32
  }
  func.func @transform_2(%arg0: i32) -> (i32, i32) {
    %c0_i32 = arith.constant 0 : i32
    %c0_i32_0 = arith.constant 0 : i32
    %c0_i32_1 = arith.constant 0 : i32
    return %c0_i32, %c0_i32_0 : i32, i32
  }
  func.func @transform_3(%arg0: i32) -> (i32, i32) {
    %c0_i32 = arith.constant 0 : i32
    %c0_i32_0 = arith.constant 0 : i32
    %c0_i32_1 = arith.constant 0 : i32
    return %c0_i32, %c0_i32_0 : i32, i32
  }
  func.func @transform_4(%arg0: i32) -> (i32, i32) {
    %c0_i32 = arith.constant 0 : i32
    %c0_i32_0 = arith.constant 0 : i32
    %c0_i32_1 = arith.constant 0 : i32
    return %c0_i32, %c0_i32_0 : i32, i32
  }
  func.func @transform_5(%arg0: i32) -> (i32, i32) {
    %c0_i32 = arith.constant 0 : i32
    %c0_i32_0 = arith.constant 0 : i32
    %c0_i32_1 = arith.constant 0 : i32
    return %c0_i32, %c0_i32_0 : i32, i32
  }
  func.func @transform_6(%arg0: i32) -> (i32, i32, i32) {
    %c0_i32 = arith.constant 0 : i32
    %c0_i32_0 = arith.constant 0 : i32
    %c0_i32_1 = arith.constant 0 : i32
    return %arg0, %c0_i32, %c0_i32_0 : i32, i32, i32
  }
}

</mosaic_0001>

<llo_original>
// kernel: tpu_custom_call.1
$region0: #{tpu_custom_call.1}
  #allocation0 [shape = 'u32[]', space=smem, size = 0x4, offset = 0x4, fixed_abs, tag = 'smem constant byte address 0x4 - core index']
  #allocation1 [shape = 'u32[144,128]{1,0:T(1,128)}', space=vmem, size = 0x12000, scoped, tag = 'internal scratch']
  #allocation2 [shape = 'bf16[4,512]{1,0:T(4,128)(2,1)}', space=vmem, size = 0x1000, scoped, tag = 'scratch operand']
  %s0 = inlined_call_operand.hbm [shape: bf16[2,4,384], index: 0, kind: input, shape index: {}]
  %s1 = inlined_call_operand.vmem [shape: f32[1,384], index: 1, kind: input, shape index: {}]
  %s2 = inlined_call_operand.vmem [shape: bf16[4,36], index: 2, kind: input, shape index: {}]
  %s3 = inlined_call_operand.vmem [shape: f32[4,1], index: 3, kind: input, shape index: {}]
  %s4 = inlined_call_operand.vmem [shape: bf16[4,36], index: 4, kind: input, shape index: {}]
  %s5 = inlined_call_operand.vmem [shape: f32[4,1], index: 5, kind: input, shape index: {}]
  %s6 = inlined_call_operand.hbm [shape: bf16[2,4,384], index: 6, kind: output, shape index: {}]
  %s7 = sld [smem:[#allocation0]]
  $region61: #{tpu_custom_call.1} parent=0
    _
  %s9 = ssub.s32 1, %s7
  %s10 = scalar_select 0, %s9, %s7
  $region1: #{tpu_custom_call.1} parent=0
    #allocation3 [shape = 'u8[6144]{0}', space=vmem, size = 0x1800, scoped, tag = 'input window, operand 0']
    #allocation4 [shape = 's32[2]{0}', space=sflag, size = 0x8, scoped, tag = 'scoped memory for tpu_custom_call.1']
    #allocation5 [shape = 's32[2]{0}', space=sflag, size = 0x8, scoped, tag = 'scoped memory for tpu_custom_call.1']
    #allocation6 [shape = 'u8[6144]{0}', space=vmem, size = 0x1800, scoped, tag = 'output window, operand 0']
    %11 = vsyncpa [#allocation4], 0
    %s12 = scalar_lea.sflag [#allocation4], 1
    %13 = vsyncpa %s12, 0
    %14 = vsyncpa [#allocation5], 0
    %s15 = scalar_lea.sflag [#allocation5], 1
    %16 = vsyncpa %s15, 0
    loop: start=0, step=1, limit=4
    $region2: #{tpu_custom_call.1} parent=1 // loop_pre_header
      _
    $region3: #{tpu_custom_call.1} parent=1 // loop_header
      %s18 = sphi 0, %s22
      %p19 = scmp.ge.s32.totalorder %s18, 4
      %s28 = sphi 0, %s30
      %s31 = sphi 0, %s28
      %s32 = sphi 0, %s31
      %s48 = sphi 0, %s32
      %s52 = sphi 0, %s52
      %s54 = sphi 0, %s52
      %s55 = sphi 0, %s54
      %s69 = sphi 0, %s55
      %s73 = sphi 0, %s73
      %s75 = sphi 0, %s73
      %s76 = sphi 0, %s75
      %s90 = sphi 0, %s76
      %s94 = sphi 0, %s94
      %s96 = sphi 0, %s94
      %s97 = sphi 0, %s96
      %s111 = sphi 0, %s97
      %s115 = sphi 0, %s115
      %s117 = sphi 0, %s115
      %s118 = sphi 0, %s117
      %s132 = sphi 0, %s118
      %s136 = sphi 0, %s136
      %s138 = sphi 0, %s136
      %s139 = sphi 0, %s138
      %s153 = sphi 0, %s139
      %s159 = sphi 0, %s161
      %s162 = sphi 0, %s159
      %s163 = sphi 0, %s162
      %s179 = sphi 0, %s163
    $region4: #{tpu_custom_call.1} parent=1 // loop_header_branch
      %21 = sbr.rel (%p19) target = $region8
    $region5: #{tpu_custom_call.1} parent=1 // loop_body
      %s23 = ssub.s32 %s18, 1
      %s24 = ssub.s32 %s18, 2
      %s25 = sadd.s32 %s18, 1
      %s26 = ssub.s32 %s18, %s25
      %p27 = scmp.eq.s32.totalorder %s26, 0
      %s29 = sadd.s32 %s28, 1
      %s30 = scalar_select %p27, %s28, %s29
      %p33 = pneg %p27
      %p34 = scmp.eq.s32.totalorder %s18, 1
      %p35 = por %p33, %p34
      %p36 = scmp.ne.s32.totalorder %s28, %s31
      %p37 = scmp.eq.s32.totalorder %s18, 0
      %p38 = por %p36, %p37
      %p39 = scmp.ne.s32.totalorder %s28, %s31
      %p40 = scmp.eq.s32.totalorder %s23, 1
      %p41 = por %p39, %p40
      %p42 = scmp.ne.s32.totalorder %s31, %s32
      %p43 = scmp.eq.s32.totalorder %s23, 0
      %p44 = por %p42, %p43
      %p45 = scmp.ne.s32.totalorder %s31, %s32
      %p46 = scmp.eq.s32.totalorder %s24, 1
      %p47 = por %p45, %p46
      %p49 = scmp.ne.s32.totalorder %s32, %s48
      %p50 = scmp.eq.s32.totalorder %s24, 0
      %p51 = por %p49, %p50
      %s53 = sadd.s32 %s52, 1
      %p56 = scmp.eq.s32.totalorder %s18, 1
      %p57 = scmp.ne.s32.totalorder %s52, %s54
      %p58 = scmp.eq.s32.totalorder %s18, 0
      %p59 = por %p57, %p58
      %p60 = scmp.ne.s32.totalorder %s52, %s54
      %p61 = scmp.eq.s32.totalorder %s23, 1
      %p62 = por %p60, %p61
      %p63 = scmp.ne.s32.totalorder %s54, %s55
      %p64 = scmp.eq.s32.totalorder %s23, 0
      %p65 = por %p63, %p64
      %p66 = scmp.ne.s32.totalorder %s54, %s55
      %p67 = scmp.eq.s32.totalorder %s24, 1
      %p68 = por %p66, %p67
      %p70 = scmp.ne.s32.totalorder %s55, %s69
      %p71 = scmp.eq.s32.totalorder %s24, 0
      %p72 = por %p70, %p71
      %s74 = sadd.s32 %s73, 1
      %p77 = scmp.eq.s32.totalorder %s18, 1
      %p78 = scmp.ne.s32.totalorder %s73, %s75
      %p79 = scmp.eq.s32.totalorder %s18, 0
      %p80 = por %p78, %p79
      %p81 = scmp.ne.s32.totalorder %s73, %s75
      %p82 = scmp.eq.s32.totalorder %s23, 1
      %p83 = por %p81, %p82
      %p84 = scmp.ne.s32.totalorder %s75, %s76
      %p85 = scmp.eq.s32.totalorder %s23, 0
      %p86 = por %p84, %p85
      %p87 = scmp.ne.s32.totalorder %s75, %s76
      %p88 = scmp.eq.s32.totalorder %s24, 1
      %p89 = por %p87, %p88
      %p91 = scmp.ne.s32.totalorder %s76, %s90
      %p92 = scmp.eq.s32.totalorder %s24, 0
      %p93 = por %p91, %p92
      %s95 = sadd.s32 %s94, 1
      %p98 = scmp.eq.s32.totalorder %s18, 1
      %p99 = scmp.ne.s32.totalorder %s94, %s96
      %p100 = scmp.eq.s32.totalorder %s18, 0
      %p101 = por %p99, %p100
      %p102 = scmp.ne.s32.totalorder %s94, %s96
      %p103 = scmp.eq.s32.totalorder %s23, 1
      %p104 = por %p102, %p103
      %p105 = scmp.ne.s32.totalorder %s96, %s97
      %p106 = scmp.eq.s32.totalorder %s23, 0
      %p107 = por %p105, %p106
      %p108 = scmp.ne.s32.totalorder %s96, %s97
      %p109 = scmp.eq.s32.totalorder %s24, 1
      %p110 = por %p108, %p109
      %p112 = scmp.ne.s32.totalorder %s97, %s111
      %p113 = scmp.eq.s32.totalorder %s24, 0
      %p114 = por %p112, %p113
      %s116 = sadd.s32 %s115, 1
      %p119 = scmp.eq.s32.totalorder %s18, 1
      %p120 = scmp.ne.s32.totalorder %s115, %s117
      %p121 = scmp.eq.s32.totalorder %s18, 0
      %p122 = por %p120, %p121
      %p123 = scmp.ne.s32.totalorder %s115, %s117
      %p124 = scmp.eq.s32.totalorder %s23, 1
      %p125 = por %p123, %p124
      %p126 = scmp.ne.s32.totalorder %s117, %s118
      %p127 = scmp.eq.s32.totalorder %s23, 0
      %p128 = por %p126, %p127
      %p129 = scmp.ne.s32.totalorder %s117, %s118
      %p130 = scmp.eq.s32.totalorder %s24, 1
      %p131 = por %p129, %p130
      %p133 = scmp.ne.s32.totalorder %s118, %s132
      %p134 = scmp.eq.s32.totalorder %s24, 0
      %p135 = por %p133, %p134
      %s137 = sadd.s32 %s136, 1
      %p140 = scmp.eq.s32.totalorder %s18, 1
      %p141 = scmp.ne.s32.totalorder %s136, %s138
      %p142 = scmp.eq.s32.totalorder %s18, 0
      %p143 = por %p141, %p142
      %p144 = scmp.ne.s32.totalorder %s136, %s138
      %p145 = scmp.eq.s32.totalorder %s23, 1
      %p146 = por %p144, %p145
      %p147 = scmp.ne.s32.totalorder %s138, %s139
      %p148 = scmp.eq.s32.totalorder %s23, 0
      %p149 = por %p147, %p148
      %p150 = scmp.ne.s32.totalorder %s138, %s139
      %p151 = scmp.eq.s32.totalorder %s24, 1
      %p152 = por %p150, %p151
      %p154 = scmp.ne.s32.totalorder %s139, %s153
      %p155 = scmp.eq.s32.totalorder %s24, 0
      %p156 = por %p154, %p155
      %s157 = ssub.s32 %s18, %s25
      %p158 = scmp.eq.s32.totalorder %s157, 0
      %s160 = sadd.s32 %s159, 1
      %s161 = scalar_select %p158, %s159, %s160
      %p164 = pneg %p158
      %p165 = scmp.eq.s32.totalorder %s18, 1
      %p166 = por %p164, %p165
      %p167 = scmp.ne.s32.totalorder %s159, %s162
      %p168 = scmp.eq.s32.totalorder %s18, 0
      %p169 = por %p167, %p168
      %p170 = scmp.ne.s32.totalorder %s159, %s162
      %p171 = scmp.eq.s32.totalorder %s23, 1
      %p172 = por %p170, %p171
      %p173 = scmp.ne.s32.totalorder %s162, %s163
      %p174 = scmp.eq.s32.totalorder %s23, 0
      %p175 = por %p173, %p174
      %p176 = scmp.ne.s32.totalorder %s162, %s163
      %p177 = scmp.eq.s32.totalorder %s24, 1
      %p178 = por %p176, %p177
      %p180 = scmp.ne.s32.totalorder %s163, %s179
      %p181 = scmp.eq.s32.totalorder %s24, 0
      %p182 = por %p180, %p181
      %p183 = scmp.le.s32.totalorder 1, %s18
      %p184 = scmp.lt.s32.totalorder %s18, 3
      %p185 = pnand %p183, %p184
      %p186 = pneg %p185
      // Predicated region
      $region9: #{tpu_custom_call.1} parent=5 // pred_check
        _
      $region10: #{tpu_custom_call.1} parent=5 // pred_check_branch
        %188 = sbr.rel (%p185) target = $region12
      $region11: #{tpu_custom_call.1} parent=5 // pred_region
        %s189 = ssub.s32 %s18, 1
        // Predicated region
        $region13: #{tpu_custom_call.1} parent=11 // pred_check
          %p190 = pneg %p65
        $region14: #{tpu_custom_call.1} parent=11 // pred_check_branch
          %192 = sbr.rel (%p190) target = $region16
        $region15: #{tpu_custom_call.1} parent=11 // pred_region
          _
        $region16: #{tpu_custom_call.1} parent=11 // pred_fallthru
          _
        // Predicated region
        $region17: #{tpu_custom_call.1} parent=11 // pred_check
          %p193 = pneg %p86
        $region18: #{tpu_custom_call.1} parent=11 // pred_check_branch
          %195 = sbr.rel (%p193) target = $region20
        $region19: #{tpu_custom_call.1} parent=11 // pred_region
          _
        $region20: #{tpu_custom_call.1} parent=11 // pred_fallthru
          _
        // Predicated region
        $region21: #{tpu_custom_call.1} parent=11 // pred_check
          %p196 = pneg %p107
        $region22: #{tpu_custom_call.1} parent=11 // pred_check_branch
          %198 = sbr.rel (%p196) target = $region24
        $region23: #{tpu_custom_call.1} parent=11 // pred_region
          _
        $region24: #{tpu_custom_call.1} parent=11 // pred_fallthru
          _
        // Predicated region
        $region25: #{tpu_custom_call.1} parent=11 // pred_check
          %p199 = pneg %p128
        $region26: #{tpu_custom_call.1} parent=11 // pred_check_branch
          %201 = sbr.rel (%p199) target = $region28
        $region27: #{tpu_custom_call.1} parent=11 // pred_region
          _
        $region28: #{tpu_custom_call.1} parent=11 // pred_fallthru
          _
        // Predicated region
        $region29: #{tpu_custom_call.1} parent=11 // pred_check
          %p202 = pneg %p149
        $region30: #{tpu_custom_call.1} parent=11 // pred_check_branch
          %204 = sbr.rel (%p202) target = $region32
        $region31: #{tpu_custom_call.1} parent=11 // pred_region
          _
        $region32: #{tpu_custom_call.1} parent=11 // pred_fallthru
          _
      $region12: #{tpu_custom_call.1} parent=5 // pred_fallthru
        _
      %p205 = scmp.lt.s32.totalorder %s18, 2
      // Predicated region
      $region33: #{tpu_custom_call.1} parent=5 // pred_check
        %p206 = pneg %p205
      $region34: #{tpu_custom_call.1} parent=5 // pred_check_branch
        %208 = sbr.rel (%p206) target = $region36
      $region35: #{tpu_custom_call.1} parent=5 // pred_region
        // Predicated region
        $region37: #{tpu_custom_call.1} parent=35 // pred_check
          %p209 = pneg %p38
        $region38: #{tpu_custom_call.1} parent=35 // pred_check_branch
          %211 = sbr.rel (%p209) target = $region40
        $region39: #{tpu_custom_call.1} parent=35 // pred_region
          %s212 = sand.u32 %s28, 1
          %s213 = scalar_lea.sflag [#allocation4], %s212
          %s214 = sand.u32 %s28, 1
          %s215 = smul.addr %s214, 6
          %s216 = scalar_lea.vmem [#allocation3], %s215
          %s218 = ssub.s32 96, 96
          %219 = vsyncadd %s213, %s218
          %s220 = smul.addr %s18, 3
          %s221 = smul.addr %s220, 32
          %s222 = scalar_lea.hbm %s0, %s221
          %s224 = sshll.u32 %s216, 4
          %s225 = int_to_ptr.vmem [resolvable:$true] %s224
          %227 = dma.hbm_to_vmem [thread:$0]  %s222, 96, %s225, %s213
        $region40: #{tpu_custom_call.1} parent=35 // pred_fallthru
          _
      $region36: #{tpu_custom_call.1} parent=5 // pred_fallthru
        _
      %p228 = scmp.le.s32.totalorder 1, %s18
      %p229 = scmp.lt.s32.totalorder %s18, 3
      %p230 = pnand %p228, %p229
      %p231 = pneg %p230
      // Predicated region
      $region41: #{tpu_custom_call.1} parent=5 // pred_check
        _
      $region42: #{tpu_custom_call.1} parent=5 // pred_check_branch
        %233 = sbr.rel (%p230) target = $region44
      $region43: #{tpu_custom_call.1} parent=5 // pred_region
        %s234 = ssub.s32 %s18, 1
        %s235 = sand.u32 %s31, 1
        %s236 = scalar_lea.sflag [#allocation4], %s235
        %s237 = sand.u32 %s31, 1
        %s238 = smul.addr %s237, 6
        %s239 = scalar_lea.vmem [#allocation3], %s238
        // Predicated region
        $region45: #{tpu_custom_call.1} parent=43 // pred_check
          %p240 = pneg %p44
        $region46: #{tpu_custom_call.1} parent=43 // pred_check_branch
          %242 = sbr.rel (%p240) target = $region48
        $region47: #{tpu_custom_call.1} parent=43 // pred_region
          %243 = dma.done %s236, 96
        $region48: #{tpu_custom_call.1} parent=43 // pred_fallthru
          _
        %s244 = sand.u32 %s31, 1
        %s245 = scalar_lea.sflag [#allocation4], %s244
        %s246 = sand.u32 %s31, 1
        %s247 = smul.addr %s246, 6
        %s248 = scalar_lea.vmem [#allocation3], %s247
        %p249 = pneg %p44
        %p250 = pneg %p41
        %p251 = pneg %p65
        %p252 = pneg %p62
        %p253 = pneg %p86
        %p254 = pneg %p83
        %p255 = pneg %p107
        %p256 = pneg %p104
        %p257 = pneg %p128
        %p258 = pneg %p125
        %p259 = pneg %p149
        %p260 = pneg %p146
        %p261 = pneg %p175
        %p262 = pneg %p172
        %s263 = sand.u32 %s162, 1
        %s264 = scalar_lea.sflag [#allocation5], %s263
        %s265 = sand.u32 %s162, 1
        %s266 = smul.addr %s265, 6
        %s267 = scalar_lea.vmem [#allocation6], %s266
        %vm269 = vcmask 148480
        %270 = vst.msk [vmem:[#allocation2] sm:$0x3] %vm269, 0
        %vm271 = vcmask 1041560
        %272 = vst.msk [vmem:[#allocation2 + $0x6] sm:$0x3] %vm271, 0
        %v273 = vld [vmem:[%s239] sm:$0x3f]
        %275 = vrot.lane.b32.xlu0 %v273, 19
        %v276 = vpop.permute.xlu0 %275
        %v277 = vrot.slane %v276, 6
        %vm278 = vcmask 154624
        %v279 = vsel %vm278, %v277, %v276
        %vm281 = vcmask 1043458
        %vm282 = vmor %vm281, %vm271
        %vm283 = vcmask 1045508
        %vm284 = vmor %vm283, %vm282
        %vm285 = vcmask 154630
        %vm286 = vmor %vm285, %vm284
        %287 = vst.msk [vmem:[#allocation2] sm:$0xff] %vm286, %v279
        %v288 = vld [vmem:[%s1] sm:$0x7]
        %v289 = vld [vmem:[#allocation2] sm:$0x3f]
        %v290 = vld [vmem:[#allocation2] sm:$0xff]
        %v292 = vcombine.high %v289, %v289
        %v294 = vunpack.c.l.s4 1983009808
        %v295 = vunpack.c.0.s8 %v294
        %v296 = vlaneseq
        %v297 = vshrl.u32 %v296, 7
        %v298 = vsub.s32 %v295, %v297
        %v299 = vrot.slane %v289, %v298
        %v301 = vunpack.c.l.s4 1983009808
        %v302 = vunpack.c.0.s8 %v301
        %v303 = vlaneseq
        %v304 = vshrl.u32 %v303, 7
        %v305 = vsub.s32 %v302, %v304
        %v306 = vrot.slane %v292, %v305
        %v307 = vcombine.high %v299, %v299
        %v309 = vcombine.low %v290, %v290
        %v311 = vunpack.c.l.s4 1983009808
        %v312 = vunpack.c.0.s8 %v311
        %v313 = vlaneseq
        %v314 = vshrl.u32 %v313, 7
        %v315 = vsub.s32 %v312, %v314
        %v316 = vrot.slane %v309, %v315
        %v318 = vunpack.c.l.s4 1983009808
        %v319 = vunpack.c.0.s8 %v318
        %v320 = vlaneseq
        %v321 = vshrl.u32 %v320, 7
        %v322 = vsub.s32 %v319, %v321
        %v323 = vrot.slane %v290, %v322
        %v324 = vcombine.high %v316, %v316
        %v325 = vcombine.high %v323, %v323
        %326 = vrot.lane.b32.xlu0 %v316, 127
        %v327 = vpop.permute.xlu0 %326
        %328 = vrot.lane.b32.xlu0 %v324, 127
        %v329 = vpop.permute.xlu0 %328
        %330 = vrot.lane.b32.xlu0 %v323, 127
        %v331 = vpop.permute.xlu0 %330
        %332 = vrot.lane.b32.xlu0 %v325, 127
        %v333 = vpop.permute.xlu0 %332
        %vm334 = vcmask 1039360
        %v335 = vsel %vm334, %v327, %v329
        %v336 = vsel %vm334, %v329, %v331
        %v337 = vsel %vm334, %v331, %v333
        %v338 = vcombine.high %v290, %v290
        %v340 = vunpack.c.l.s4 1983009808
        %v341 = vunpack.c.0.s8 %v340
        %v342 = vlaneseq
        %v343 = vshrl.u32 %v342, 7
        %v344 = vsub.s32 %v341, %v343
        %v345 = vrot.slane %v338, %v344
        %v346 = vcombine.low %v323, %v323
        %v347 = vcombine.low %v345, %v345
        %348 = vrot.lane.b32.xlu0 %v346, 126
        %v349 = vpop.permute.xlu0 %348
        %350 = vrot.lane.b32.xlu0 %v323, 126
        %v351 = vpop.permute.xlu0 %350
        %352 = vrot.lane.b32.xlu0 %v347, 126
        %v353 = vpop.permute.xlu0 %352
        %354 = vrot.lane.b32.xlu0 %v345, 126
        %v355 = vpop.permute.xlu0 %354
        %vm356 = vcmask 1031168
        %v357 = vsel %vm356, %v349, %v351
        %v358 = vsel %vm356, %v351, %v353
        %v359 = vsel %vm356, %v353, %v355
        %v360 = vcombine.low %v316, %v316
        %361 = vrot.lane.b32.xlu0 %v360, 110
        %v362 = vpop.permute.xlu0 %361
        %363 = vrot.lane.b32.xlu0 %v316, 110
        %v364 = vpop.permute.xlu0 %363
        %365 = vrot.lane.b32.xlu0 %v346, 110
        %v366 = vpop.permute.xlu0 %365
        %367 = vrot.lane.b32.xlu0 %v323, 110
        %v368 = vpop.permute.xlu0 %367
        %vm369 = vcmask 900096
        %v370 = vsel %vm369, %v362, %v364
        %v371 = vsel %vm369, %v364, %v366
        %v372 = vsel %vm369, %v366, %v368
        %v373 = vcombine.high %v345, %v345
        %374 = vrot.lane.b32.xlu0 %v323, 109
        %v375 = vpop.permute.xlu0 %374
        %376 = vrot.lane.b32.xlu0 %v325, 109
        %v377 = vpop.permute.xlu0 %376
        %378 = vrot.lane.b32.xlu0 %v345, 109
        %v379 = vpop.permute.xlu0 %378
        %380 = vrot.lane.b32.xlu0 %v373, 109
        %v381 = vpop.permute.xlu0 %380
        %vm382 = vcmask 891904
        %v383 = vsel %vm382, %v375, %v377
        %v384 = vsel %vm382, %v377, %v379
        %v385 = vsel %vm382, %v379, %v381
        %386 = vrot.lane.b32.xlu0 %v316, 108
        %v387 = vpop.permute.xlu0 %386
        %388 = vrot.lane.b32.xlu0 %v324, 108
        %v389 = vpop.permute.xlu0 %388
        %390 = vrot.lane.b32.xlu0 %v323, 108
        %v391 = vpop.permute.xlu0 %390
        %392 = vrot.lane.b32.xlu0 %v325, 108
        %v393 = vpop.permute.xlu0 %392
        %vm394 = vcmask 883712
        %v395 = vsel %vm394, %v387, %v389
        %v396 = vsel %vm394, %v389, %v391
        %v397 = vsel %vm394, %v391, %v393
        %398 = vrot.lane.b32.xlu0 %v346, 92
        %v399 = vpop.permute.xlu0 %398
        %400 = vrot.lane.b32.xlu0 %v323, 92
        %v401 = vpop.permute.xlu0 %400
        %402 = vrot.lane.b32.xlu0 %v347, 92
        %v403 = vpop.permute.xlu0 %402
        %404 = vrot.lane.b32.xlu0 %v345, 92
        %v405 = vpop.permute.xlu0 %404
        %vm406 = vcmask 752640
        %v407 = vsel %vm406, %v399, %v401
        %v408 = vsel %vm406, %v401, %v403
        %v409 = vsel %vm406, %v403, %v405
        %410 = vrot.lane.b32.xlu0 %v360, 91
        %v411 = vpop.permute.xlu0 %410
        %412 = vrot.lane.b32.xlu0 %v316, 91
        %v413 = vpop.permute.xlu0 %412
        %414 = vrot.lane.b32.xlu0 %v346, 91
        %v415 = vpop.permute.xlu0 %414
        %416 = vrot.lane.b32.xlu0 %v323, 91
        %v417 = vpop.permute.xlu0 %416
        %vm418 = vcmask 744448
        %v419 = vsel %vm418, %v411, %v413
        %v420 = vsel %vm418, %v413, %v415
        %v421 = vsel %vm418, %v415, %v417
        %422 = vrot.lane.b32.xlu0 %v323, 90
        %v423 = vpop.permute.xlu0 %422
        %424 = vrot.lane.b32.xlu0 %v325, 90
        %v425 = vpop.permute.xlu0 %424
        %426 = vrot.lane.b32.xlu0 %v345, 90
        %v427 = vpop.permute.xlu0 %426
        %428 = vrot.lane.b32.xlu0 %v373, 90
        %v429 = vpop.permute.xlu0 %428
        %vm430 = vcmask 736256
        %v431 = vsel %vm430, %v423, %v425
        %v432 = vsel %vm430, %v425, %v427
        %v433 = vsel %vm430, %v427, %v429
        %vm434 = vcmask 1041408
        %v437 = vsel %vm434, %v299, %v335
        %v440 = vsel %vm434, %v307, %v336
        %v443 = vsel %vm434, %v306, %v337
        %vm444 = vcmask 1043456
        %v446 = vsel %vm444, %v437, %v357
        %v448 = vsel %vm444, %v440, %v358
        %v450 = vsel %vm444, %v443, %v359
        %vm451 = vcmask 1045504
        %v453 = vsel %vm451, %v446, %v370
        %v456 = vsel %vm451, %v448, %v371
        %v459 = vsel %vm451, %v450, %v372
        %v463 = vsel %vm434, %v383, %v395
        %v466 = vsel %vm434, %v384, %v396
        %v469 = vsel %vm434, %v385, %v397
        %v471 = vsel %vm444, %v463, %v407
        %v473 = vsel %vm444, %v466, %v408
        %v475 = vsel %vm444, %v469, %v409
        %v477 = vsel %vm451, %v471, %v419
        %v480 = vsel %vm451, %v473, %v420
        %v483 = vsel %vm451, %v475, %v421
        %v485 = vld [vmem:[%s2] sm:$0x3]
        %v486 = vld [vmem:[%s3] sm:$0xf]
        %488 = vset.pattern.permute.xlu0 0
        %489 = vperm.xlu0 %488, %v486
        %v490 = vpop.permute.xlu0 %489
        %vm492 = vcmask 293888
        %v494 = vsel %vm492, %v485, 0
        %v497 = vsel %vm434, %v431, 0
        %v500 = vsel %vm434, %v432, 0
        %v503 = vsel %vm434, %v433, 0
        %505 = vmatprep.subr.bf16.mxu0 %v456
        %506 = vmatpush1.bf16.msra.mxu0 %v453
        %507 = vmatprep.subr.bf16.mxu0 %v480
        %508 = vmatpush1.bf16.msra.mxu0 %v477
        %509 = vmatprep.subr.bf16.mxu0 %v500
        %510 = vmatpush1.bf16.msra.mxu0 %v497
        %511 = vmatprep.subr.bf16.mxu0 0
        %512 = vmatpush1.bf16.msra.mxu0 0
        %513 = vmatprep.subr.bf16.mxu0 0
        %514 = vmatpush1.bf16.msra.mxu0 0
        %515 = vmatprep.subr.bf16.mxu0 0
        %516 = vmatpush1.bf16.msra.mxu0 0
        %517 = vmatprep.subr.bf16.mxu0 0
        %518 = vmatpush1.bf16.msra.mxu0 0
        %519 = vmatprep.subr.bf16.mxu0 0
        %520 = vmatpush1.bf16.msra.mxu0 0
        %521 = vmatprep.subr.bf16.mxu0 0
        %522 = vmatpush1.bf16.msra.mxu0 0
        %523 = vmatprep.subr.bf16.mxu0 0
        %524 = vmatpush1.bf16.msra.mxu0 0
        %525 = vmatprep.subr.bf16.mxu0 0
        %526 = vmatpush1.bf16.msra.mxu0 0
        %527 = vmatprep.subr.bf16.mxu0 0
        %528 = vmatpush1.bf16.msra.mxu0 0
        %529 = vmatprep.subr.bf16.mxu0 0
        %530 = vmatpush1.bf16.msra.mxu0 0
        %531 = vmatprep.subr.bf16.mxu0 0
        %532 = vmatpush1.bf16.msra.mxu0 0
        %533 = vmatprep.subr.bf16.mxu0 0
        %534 = vmatpush1.bf16.msra.mxu0 0
        %535 = vmatprep.subr.bf16.mxu0 0
        %536 = vmatpush1.bf16.msra.mxu0 0
        %537 = vmatprep.mubr.bf16.mxu0 0
        %538 = vmatmul.mubr.bf16.gmra.mrb[0].mxu0 %v494
        %v539 = vpop.f32.mrb[0].mxu0
        %v540 = vadd.f32 %v490, %v539
        %v541 = vpop.f32.mrb[0].mxu0
        %v542 = vadd.f32 %v490, %v541
        %v543 = vpop.f32.mrb[0].mxu0
        %v544 = vpop.f32.mrb[0].mxu0
        %545 = vdwg.mxu0
        %546 = vmatprep.subr.bf16.mxu0 0
        %547 = vmatpush1.bf16.msra.mxu0 %v459
        %548 = vmatprep.subr.bf16.mxu0 0
        %549 = vmatpush1.bf16.msra.mxu0 %v483
        %550 = vmatprep.subr.bf16.mxu0 0
        %551 = vmatpush1.bf16.msra.mxu0 %v503
        %552 = vmatprep.subr.bf16.mxu0 0
        %553 = vmatpush1.bf16.msra.mxu0 0
        %554 = vmatprep.subr.bf16.mxu0 0
        %555 = vmatpush1.bf16.msra.mxu0 0
        %556 = vmatprep.subr.bf16.mxu0 0
        %557 = vmatpush1.bf16.msra.mxu0 0
        %558 = vmatprep.subr.bf16.mxu0 0
        %559 = vmatpush1.bf16.msra.mxu0 0
        %560 = vmatprep.subr.bf16.mxu0 0
        %561 = vmatpush1.bf16.msra.mxu0 0
        %562 = vmatprep.subr.bf16.mxu0 0
        %563 = vmatpush1.bf16.msra.mxu0 0
        %564 = vmatprep.subr.bf16.mxu0 0
        %565 = vmatpush1.bf16.msra.mxu0 0
        %566 = vmatprep.subr.bf16.mxu0 0
        %567 = vmatpush1.bf16.msra.mxu0 0
        %568 = vmatprep.subr.bf16.mxu0 0
        %569 = vmatpush1.bf16.msra.mxu0 0
        %570 = vmatprep.subr.bf16.mxu0 0
        %571 = vmatpush1.bf16.msra.mxu0 0
        %572 = vmatprep.subr.bf16.mxu0 0
        %573 = vmatpush1.bf16.msra.mxu0 0
        %574 = vmatprep.subr.bf16.mxu0 0
        %575 = vmatpush1.bf16.msra.mxu0 0
        %576 = vmatprep.subr.bf16.mxu0 0
        %577 = vmatpush1.bf16.msra.mxu0 0
        %578 = vmatprep.mubr.bf16.mxu0 0
        %579 = vmatmul.mubr.bf16.gmra.mrb[0].mxu0 %v494
        %v580 = vpop.f32.mrb[0].mxu0
        %v581 = vadd.f32 %v490, %v580
        %v582 = vpop.f32.mrb[0].mxu0
        %v583 = vpop.f32.mrb[0].mxu0
        %v584 = vpop.f32.mrb[0].mxu0
        %585 = vdwg.mxu0
        %v586 = vmax.f32 %v540, 0.0
        %v587 = vmax.f32 %v542, 0.0
        %v588 = vmax.f32 %v581, 0.0
        %v590 = vlaneseq
        %v591 = vshrl.u32 %v590, 7
        %v592 = vsub.s32 0, %v591
        %v593 = vrot.slane %v288, %v592
        %v594 = vlaneseq
        %v595 = vshrl.u32 %v594, 7
        %v596 = vsub.s32 1, %v595
        %v597 = vrot.slane %v288, %v596
        %v598 = vlaneseq
        %v599 = vshrl.u32 %v598, 7
        %v600 = vsub.s32 2, %v599
        %v601 = vrot.slane %v288, %v600
        %v605 = vmul.f32 %v586, %v593
        %v606 = vmul.f32 %v587, %v597
        %v607 = vmul.f32 %v588, %v601
        %v608 = vpack.c.bf16 %v605, %v605
        %v609 = vpack.c.bf16 %v606, %v606
        %v610 = vpack.c.bf16 %v607, %v607
        %v614 = vcombine.low %v608, %v609
        %v616 = vunpack.c.l.s4 1983009808
        %v617 = vunpack.c.0.s8 %v616
        %v618 = vlaneseq
        %v619 = vshrl.u32 %v618, 7
        %v620 = vsub.s32 %v617, %v619
        %v621 = vrot.slane %v614, %v620
        %v623 = vunpack.c.l.s4 1983009808
        %v624 = vunpack.c.0.s8 %v623
        %v625 = vlaneseq
        %v626 = vshrl.u32 %v625, 7
        %v627 = vsub.s32 %v624, %v626
        %v628 = vrot.slane %v610, %v627
        %v629 = vcombine.low %v621, %v628
        %630 = vrot.lane.b32.xlu0 %v629, 19
        %v631 = vpop.permute.xlu0 %630
        %v632 = vrot.slane %v631, 6
        %v633 = vsel %vm278, %v632, %v631
        %635 = vst.msk [vmem:[#allocation2] sm:$0xff] %vm286, %v633
        %v636 = vld [vmem:[%s239] sm:$0x3f]
        %v637 = vunpack.c.l.bf16 %v636
        %v638 = vunpack.c.h.bf16 %v636
        %v639 = vld [vmem:[#allocation2] sm:$0x3f]
        %v640 = vld [vmem:[#allocation2] sm:$0xff]
        %v642 = vcombine.high %v639, %v639
        %v644 = vunpack.c.l.s4 1983009808
        %v645 = vunpack.c.0.s8 %v644
        %v646 = vlaneseq
        %v647 = vshrl.u32 %v646, 7
        %v648 = vsub.s32 %v645, %v647
        %v649 = vrot.slane %v639, %v648
        %v651 = vunpack.c.l.s4 1983009808
        %v652 = vunpack.c.0.s8 %v651
        %v653 = vlaneseq
        %v654 = vshrl.u32 %v653, 7
        %v655 = vsub.s32 %v652, %v654
        %v656 = vrot.slane %v642, %v655
        %v657 = vcombine.high %v649, %v649
        %v659 = vcombine.low %v640, %v640
        %v661 = vunpack.c.l.s4 1983009808
        %v662 = vunpack.c.0.s8 %v661
        %v663 = vlaneseq
        %v664 = vshrl.u32 %v663, 7
        %v665 = vsub.s32 %v662, %v664
        %v666 = vrot.slane %v659, %v665
        %v668 = vunpack.c.l.s4 1983009808
        %v669 = vunpack.c.0.s8 %v668
        %v670 = vlaneseq
        %v671 = vshrl.u32 %v670, 7
        %v672 = vsub.s32 %v669, %v671
        %v673 = vrot.slane %v640, %v672
        %v674 = vcombine.high %v666, %v666
        %v675 = vcombine.high %v673, %v673
        %676 = vrot.lane.b32.xlu0 %v666, 127
        %v677 = vpop.permute.xlu0 %676
        %678 = vrot.lane.b32.xlu0 %v674, 127
        %v679 = vpop.permute.xlu0 %678
        %680 = vrot.lane.b32.xlu0 %v673, 127
        %v681 = vpop.permute.xlu0 %680
        %682 = vrot.lane.b32.xlu0 %v675, 127
        %v683 = vpop.permute.xlu0 %682
        %v684 = vsel %vm334, %v677, %v679
        %v685 = vsel %vm334, %v679, %v681
        %v686 = vsel %vm334, %v681, %v683
        %v687 = vcombine.high %v640, %v640
        %v689 = vunpack.c.l.s4 1983009808
        %v690 = vunpack.c.0.s8 %v689
        %v691 = vlaneseq
        %v692 = vshrl.u32 %v691, 7
        %v693 = vsub.s32 %v690, %v692
        %v694 = vrot.slane %v687, %v693
        %v695 = vcombine.low %v673, %v673
        %v696 = vcombine.low %v694, %v694
        %697 = vrot.lane.b32.xlu0 %v695, 126
        %v698 = vpop.permute.xlu0 %697
        %699 = vrot.lane.b32.xlu0 %v673, 126
        %v700 = vpop.permute.xlu0 %699
        %701 = vrot.lane.b32.xlu0 %v696, 126
        %v702 = vpop.permute.xlu0 %701
        %703 = vrot.lane.b32.xlu0 %v694, 126
        %v704 = vpop.permute.xlu0 %703
        %v705 = vsel %vm356, %v698, %v700
        %v706 = vsel %vm356, %v700, %v702
        %v707 = vsel %vm356, %v702, %v704
        %v708 = vcombine.low %v666, %v666
        %709 = vrot.lane.b32.xlu0 %v708, 110
        %v710 = vpop.permute.xlu0 %709
        %711 = vrot.lane.b32.xlu0 %v666, 110
        %v712 = vpop.permute.xlu0 %711
        %713 = vrot.lane.b32.xlu0 %v695, 110
        %v714 = vpop.permute.xlu0 %713
        %715 = vrot.lane.b32.xlu0 %v673, 110
        %v716 = vpop.permute.xlu0 %715
        %v717 = vsel %vm369, %v710, %v712
        %v718 = vsel %vm369, %v712, %v714
        %v719 = vsel %vm369, %v714, %v716
        %v720 = vcombine.high %v694, %v694
        %721 = vrot.lane.b32.xlu0 %v673, 109
        %v722 = vpop.permute.xlu0 %721
        %723 = vrot.lane.b32.xlu0 %v675, 109
        %v724 = vpop.permute.xlu0 %723
        %725 = vrot.lane.b32.xlu0 %v694, 109
        %v726 = vpop.permute.xlu0 %725
        %727 = vrot.lane.b32.xlu0 %v720, 109
        %v728 = vpop.permute.xlu0 %727
        %v729 = vsel %vm382, %v722, %v724
        %v730 = vsel %vm382, %v724, %v726
        %v731 = vsel %vm382, %v726, %v728
        %732 = vrot.lane.b32.xlu0 %v666, 108
        %v733 = vpop.permute.xlu0 %732
        %734 = vrot.lane.b32.xlu0 %v674, 108
        %v735 = vpop.permute.xlu0 %734
        %736 = vrot.lane.b32.xlu0 %v673, 108
        %v737 = vpop.permute.xlu0 %736
        %738 = vrot.lane.b32.xlu0 %v675, 108
        %v739 = vpop.permute.xlu0 %738
        %v740 = vsel %vm394, %v733, %v735
        %v741 = vsel %vm394, %v735, %v737
        %v742 = vsel %vm394, %v737, %v739
        %743 = vrot.lane.b32.xlu0 %v695, 92
        %v744 = vpop.permute.xlu0 %743
        %745 = vrot.lane.b32.xlu0 %v673, 92
        %v746 = vpop.permute.xlu0 %745
        %747 = vrot.lane.b32.xlu0 %v696, 92
        %v748 = vpop.permute.xlu0 %747
        %749 = vrot.lane.b32.xlu0 %v694, 92
        %v750 = vpop.permute.xlu0 %749
        %v751 = vsel %vm406, %v744, %v746
        %v752 = vsel %vm406, %v746, %v748
        %v753 = vsel %vm406, %v748, %v750
        %754 = vrot.lane.b32.xlu0 %v708, 91
        %v755 = vpop.permute.xlu0 %754
        %756 = vrot.lane.b32.xlu0 %v666, 91
        %v757 = vpop.permute.xlu0 %756
        %758 = vrot.lane.b32.xlu0 %v695, 91
        %v759 = vpop.permute.xlu0 %758
        %760 = vrot.lane.b32.xlu0 %v673, 91
        %v761 = vpop.permute.xlu0 %760
        %v762 = vsel %vm418, %v755, %v757
        %v763 = vsel %vm418, %v757, %v759
        %v764 = vsel %vm418, %v759, %v761
        %765 = vrot.lane.b32.xlu0 %v673, 90
        %v766 = vpop.permute.xlu0 %765
        %767 = vrot.lane.b32.xlu0 %v675, 90
        %v768 = vpop.permute.xlu0 %767
        %769 = vrot.lane.b32.xlu0 %v694, 90
        %v770 = vpop.permute.xlu0 %769
        %771 = vrot.lane.b32.xlu0 %v720, 90
        %v772 = vpop.permute.xlu0 %771
        %v773 = vsel %vm430, %v766, %v768
        %v774 = vsel %vm430, %v768, %v770
        %v775 = vsel %vm430, %v770, %v772
        %v778 = vsel %vm434, %v649, %v684
        %v781 = vsel %vm434, %v657, %v685
        %v784 = vsel %vm434, %v656, %v686
        %v786 = vsel %vm444, %v778, %v705
        %v788 = vsel %vm444, %v781, %v706
        %v790 = vsel %vm444, %v784, %v707
        %v792 = vsel %vm451, %v786, %v717
        %v795 = vsel %vm451, %v788, %v718
        %v798 = vsel %vm451, %v790, %v719
        %v802 = vsel %vm434, %v729, %v740
        %v805 = vsel %vm434, %v730, %v741
        %v808 = vsel %vm434, %v731, %v742
        %v810 = vsel %vm444, %v802, %v751
        %v812 = vsel %vm444, %v805, %v752
        %v814 = vsel %vm444, %v808, %v753
        %v816 = vsel %vm451, %v810, %v762
        %v819 = vsel %vm451, %v812, %v763
        %v822 = vsel %vm451, %v814, %v764
        %v824 = vld [vmem:[%s4] sm:$0x3]
        %v825 = vld [vmem:[%s5] sm:$0xf]
        %827 = vset.pattern.permute.xlu0 0
        %828 = vperm.xlu0 %827, %v825
        %v829 = vpop.permute.xlu0 %828
        %v832 = vsel %vm492, %v824, 0
        %v835 = vsel %vm434, %v773, 0
        %v838 = vsel %vm434, %v774, 0
        %v841 = vsel %vm434, %v775, 0
        %843 = vmatprep.subr.bf16.mxu0 %v795
        %844 = vmatpush1.bf16.msra.mxu0 %v792
        %845 = vmatprep.subr.bf16.mxu0 %v819
        %846 = vmatpush1.bf16.msra.mxu0 %v816
        %847 = vmatprep.subr.bf16.mxu0 %v838
        %848 = vmatpush1.bf16.msra.mxu0 %v835
        %849 = vmatprep.subr.bf16.mxu0 0
        %850 = vmatpush1.bf16.msra.mxu0 0
        %851 = vmatprep.subr.bf16.mxu0 0
        %852 = vmatpush1.bf16.msra.mxu0 0
        %853 = vmatprep.subr.bf16.mxu0 0
        %854 = vmatpush1.bf16.msra.mxu0 0
        %855 = vmatprep.subr.bf16.mxu0 0
        %856 = vmatpush1.bf16.msra.mxu0 0
        %857 = vmatprep.subr.bf16.mxu0 0
        %858 = vmatpush1.bf16.msra.mxu0 0
        %859 = vmatprep.subr.bf16.mxu0 0
        %860 = vmatpush1.bf16.msra.mxu0 0
        %861 = vmatprep.subr.bf16.mxu0 0
        %862 = vmatpush1.bf16.msra.mxu0 0
        %863 = vmatprep.subr.bf16.mxu0 0
        %864 = vmatpush1.bf16.msra.mxu0 0
        %865 = vmatprep.subr.bf16.mxu0 0
        %866 = vmatpush1.bf16.msra.mxu0 0
        %867 = vmatprep.subr.bf16.mxu0 0
        %868 = vmatpush1.bf16.msra.mxu0 0
        %869 = vmatprep.subr.bf16.mxu0 0
        %870 = vmatpush1.bf16.msra.mxu0 0
        %871 = vmatprep.subr.bf16.mxu0 0
        %872 = vmatpush1.bf16.msra.mxu0 0
        %873 = vmatprep.subr.bf16.mxu0 0
        %874 = vmatpush1.bf16.msra.mxu0 0
        %875 = vmatprep.mubr.bf16.mxu0 0
        %876 = vmatmul.mubr.bf16.gmra.mrb[0].mxu0 %v832
        %v877 = vpop.f32.mrb[0].mxu0
        %v878 = vadd.f32 %v829, %v877
        %v879 = vpop.f32.mrb[0].mxu0
        %v880 = vadd.f32 %v829, %v879
        %v881 = vpop.f32.mrb[0].mxu0
        %v882 = vpop.f32.mrb[0].mxu0
        %883 = vdwg.mxu0
        %884 = vmatprep.subr.bf16.mxu0 0
        %885 = vmatpush1.bf16.msra.mxu0 %v798
        %886 = vmatprep.subr.bf16.mxu0 0
        %887 = vmatpush1.bf16.msra.mxu0 %v822
        %888 = vmatprep.subr.bf16.mxu0 0
        %889 = vmatpush1.bf16.msra.mxu0 %v841
        %890 = vmatprep.subr.bf16.mxu0 0
        %891 = vmatpush1.bf16.msra.mxu0 0
        %892 = vmatprep.subr.bf16.mxu0 0
        %893 = vmatpush1.bf16.msra.mxu0 0
        %894 = vmatprep.subr.bf16.mxu0 0
        %895 = vmatpush1.bf16.msra.mxu0 0
        %896 = vmatprep.subr.bf16.mxu0 0
        %897 = vmatpush1.bf16.msra.mxu0 0
        %898 = vmatprep.subr.bf16.mxu0 0
        %899 = vmatpush1.bf16.msra.mxu0 0
        %900 = vmatprep.subr.bf16.mxu0 0
        %901 = vmatpush1.bf16.msra.mxu0 0
        %902 = vmatprep.subr.bf16.mxu0 0
        %903 = vmatpush1.bf16.msra.mxu0 0
        %904 = vmatprep.subr.bf16.mxu0 0
        %905 = vmatpush1.bf16.msra.mxu0 0
        %906 = vmatprep.subr.bf16.mxu0 0
        %907 = vmatpush1.bf16.msra.mxu0 0
        %908 = vmatprep.subr.bf16.mxu0 0
        %909 = vmatpush1.bf16.msra.mxu0 0
        %910 = vmatprep.subr.bf16.mxu0 0
        %911 = vmatpush1.bf16.msra.mxu0 0
        %912 = vmatprep.subr.bf16.mxu0 0
        %913 = vmatpush1.bf16.msra.mxu0 0
        %914 = vmatprep.subr.bf16.mxu0 0
        %915 = vmatpush1.bf16.msra.mxu0 0
        %916 = vmatprep.mubr.bf16.mxu0 0
        %917 = vmatmul.mubr.bf16.gmra.mrb[0].mxu0 %v832
        %v918 = vpop.f32.mrb[0].mxu0
        %v919 = vadd.f32 %v829, %v918
        %v920 = vpop.f32.mrb[0].mxu0
        %v921 = vpop.f32.mrb[0].mxu0
        %v922 = vpop.f32.mrb[0].mxu0
        %923 = vdwg.mxu0
        %v925 = vcombine.high %v637, %v637
        %v927 = vadd.f32 %v878, %v637
        %v928 = vadd.f32 %v880, %v925
        %v929 = vadd.f32 %v919, %v638
        %v930 = vmax.f32 %v927, 0.0
        %v931 = vmax.f32 %v928, 0.0
        %v932 = vmax.f32 %v929, 0.0
        %v933 = vmul.f32 %v930, %v593
        %v934 = vmul.f32 %v931, %v597
        %v935 = vmul.f32 %v932, %v601
        %v936 = vpack.c.bf16 %v933, %v933
        %v937 = vpack.c.bf16 %v934, %v934
        %v938 = vpack.c.bf16 %v935, %v935
        %v942 = vcombine.low %v936, %v937
        %v944 = vunpack.c.l.s4 1983009808
        %v945 = vunpack.c.0.s8 %v944
        %v946 = vlaneseq
        %v947 = vshrl.u32 %v946, 7
        %v948 = vsub.s32 %v945, %v947
        %v949 = vrot.slane %v942, %v948
        %v951 = vunpack.c.l.s4 1983009808
        %v952 = vunpack.c.0.s8 %v951
        %v953 = vlaneseq
        %v954 = vshrl.u32 %v953, 7
        %v955 = vsub.s32 %v952, %v954
        %v956 = vrot.slane %v938, %v955
        %v957 = vcombine.low %v949, %v956
        %959 = vst [vmem:[%s267] sm:$0x3f] %v957
        %s960 = sand.u32 %s162, 1
        %s961 = scalar_lea.sflag [#allocation5], %s960
        %s962 = sand.u32 %s162, 1
        %s963 = smul.addr %s962, 6
        %s964 = scalar_lea.vmem [#allocation6], %s963
        // Predicated region
        $region49: #{tpu_custom_call.1} parent=43 // pred_check
          %p965 = pneg %p172
        $region50: #{tpu_custom_call.1} parent=43 // pred_check_branch
          %967 = sbr.rel (%p965) target = $region52
        $region51: #{tpu_custom_call.1} parent=43 // pred_region
          %s969 = ssub.s32 96, 96
          %970 = vsyncadd %s961, %s969
          %s971 = smul.addr %s23, 3
          %s972 = smul.addr %s971, 32
          %s973 = scalar_lea.hbm %s6, %s972
          %s975 = sshll.u32 %s964, 4
          %s976 = int_to_ptr.vmem [resolvable:$true] %s975
          %978 = dma.vmem_to_hbm [thread:$0]  %s976, 96, %s973, %s961
        $region52: #{tpu_custom_call.1} parent=43 // pred_fallthru
          _
      $region44: #{tpu_custom_call.1} parent=5 // pred_fallthru
        _
      %p979 = scmp.le.s32.totalorder 2, %s18
      // Predicated region
      $region53: #{tpu_custom_call.1} parent=5 // pred_check
        %p980 = pneg %p979
      $region54: #{tpu_custom_call.1} parent=5 // pred_check_branch
        %982 = sbr.rel (%p980) target = $region56
      $region55: #{tpu_custom_call.1} parent=5 // pred_region
        %s983 = ssub.s32 %s18, 2
        // Predicated region
        $region57: #{tpu_custom_call.1} parent=55 // pred_check
          %p984 = pneg %p178
        $region58: #{tpu_custom_call.1} parent=55 // pred_check_branch
          %986 = sbr.rel (%p984) target = $region60
        $region59: #{tpu_custom_call.1} parent=55 // pred_region
          %s987 = sand.u32 %s163, 1
          %s988 = scalar_lea.sflag [#allocation5], %s987
          %s989 = sand.u32 %s163, 1
          %s990 = smul.addr %s989, 6
          %s991 = scalar_lea.vmem [#allocation6], %s990
          %992 = dma.done %s988, 96
        $region60: #{tpu_custom_call.1} parent=55 // pred_fallthru
          _
      $region56: #{tpu_custom_call.1} parent=5 // pred_fallthru
        _
    $region6: #{tpu_custom_call.1} parent=1 // loop_footer
      %s22 = sadd.s32 1, %s18
    $region7: #{tpu_custom_call.1} parent=1 // loop_footer_branch
      %17 = sbr.rel target = $region3
    $region8: #{tpu_custom_call.1} parent=1 // loop_exit
      _
    %993 = vsyncpa [#allocation4], 1
    %s994 = scalar_lea.sflag [#allocation4], 1
    %995 = vsyncpa %s994, 1
    %996 = vsyncpa [#allocation5], 1
    %s997 = scalar_lea.sflag [#allocation5], 1
    %998 = vsyncpa %s997, 1

// kernel: tpu_custom_call.1
$region0: #{tpu_custom_call.1}
  #allocation0 [shape = 'u32[]', space=smem, size = 0x4, offset = 0x4, fixed_abs, tag = 'smem constant byte address 0x4 - core index']
  #allocation1 [shape = 'u32[144,128]{1,0:T(1,128)}', space=vmem, size = 0x12000, scoped, tag = 'internal scratch']
  #allocation2 [shape = 'bf16[4,512]{1,0:T(4,128)(2,1)}', space=vmem, size = 0x1000, scoped, tag = 'scratch operand']
  %s0 = inlined_call_operand.hbm [shape: bf16[2,4,384], index: 0, kind: input, shape index: {}]
  %s1 = inlined_call_operand.vmem [shape: f32[1,384], index: 1, kind: input, shape index: {}]
  %s2 = inlined_call_operand.vmem [shape: bf16[4,36], index: 2, kind: input, shape index: {}]
  %s3 = inlined_call_operand.vmem [shape: f32[4,1], index: 3, kind: input, shape index: {}]
  %s4 = inlined_call_operand.vmem [shape: bf16[4,36], index: 4, kind: input, shape index: {}]
  %s5 = inlined_call_operand.vmem [shape: f32[4,1], index: 5, kind: input, shape index: {}]
  %s6 = inlined_call_operand.hbm [shape: bf16[2,4,384], index: 6, kind: output, shape index: {}]
  %s7 = sld [smem:[#allocation0]]
  $region61: #{tpu_custom_call.1} parent=0
    _
  %s9 = ssub.s32 1, %s7
  %s10 = scalar_select 0, %s9, %s7
  $region1: #{tpu_custom_call.1} parent=0
    #allocation3 [shape = 'u8[6144]{0}', space=vmem, size = 0x1800, scoped, tag = 'input window, operand 0']
    #allocation4 [shape = 's32[2]{0}', space=sflag, size = 0x8, scoped, tag = 'scoped memory for tpu_custom_call.1']
    #allocation5 [shape = 's32[2]{0}', space=sflag, size = 0x8, scoped, tag = 'scoped memory for tpu_custom_call.1']
    #allocation6 [shape = 'u8[6144]{0}', space=vmem, size = 0x1800, scoped, tag = 'output window, operand 0']
    %11 = vsyncpa [#allocation4], 0
    %s12 = scalar_lea.sflag [#allocation4], 1
    %13 = vsyncpa %s12, 0
    %14 = vsyncpa [#allocation5], 0
    %s15 = scalar_lea.sflag [#allocation5], 1
    %16 = vsyncpa %s15, 0
    loop: start=0, step=1, limit=4
    $region2: #{tpu_custom_call.1} parent=1 // loop_pre_header
      _
    $region3: #{tpu_custom_call.1} parent=1 // loop_header
      %s18 = sphi 0, %s22
      %p19 = scmp.ge.s32.totalorder %s18, 4
      %s28 = sphi 0, %s30
      %s31 = sphi 0, %s28
      %s32 = sphi 0, %s31
      %s48 = sphi 0, %s32
      %s52 = sphi 0, %s52
      %s54 = sphi 0, %s52
      %s55 = sphi 0, %s54
      %s69 = sphi 0, %s55
      %s73 = sphi 0, %s73
      %s75 = sphi 0, %s73
      %s76 = sphi 0, %s75
      %s90 = sphi 0, %s76
      %s94 = sphi 0, %s94
      %s96 = sphi 0, %s94
      %s97 = sphi 0, %s96
      %s111 = sphi 0, %s97
      %s115 = sphi 0, %s115
      %s117 = sphi 0, %s115
      %s118 = sphi 0, %s117
      %s132 = sphi 0, %s118
      %s136 = sphi 0, %s136
      %s138 = sphi 0, %s136
      %s139 = sphi 0, %s138
      %s153 = sphi 0, %s139
      %s159 = sphi 0, %s161
      %s162 = sphi 0, %s159
      %s163 = sphi 0, %s162
      %s179 = sphi 0, %s163
    $region4: #{tpu_custom_call.1} parent=1 // loop_header_branch
      %21 = sbr.rel (%p19) target = $region8
    $region5: #{tpu_custom_call.1} parent=1 // loop_body
      %s23 = ssub.s32 %s18, 1
      %s24 = ssub.s32 %s18, 2
      %s25 = sadd.s32 %s18, 1
      %s26 = ssub.s32 %s18, %s25
      %p27 = scmp.eq.s32.totalorder %s26, 0
      %s29 = sadd.s32 %s28, 1
      %s30 = scalar_select %p27, %s28, %s29
      %p33 = pneg %p27
      %p34 = scmp.eq.s32.totalorder %s18, 1
      %p35 = por %p33, %p34
      %p36 = scmp.ne.s32.totalorder %s28, %s31
      %p37 = scmp.eq.s32.totalorder %s18, 0
      %p38 = por %p36, %p37
      %p39 = scmp.ne.s32.totalorder %s28, %s31
      %p40 = scmp.eq.s32.totalorder %s23, 1
      %p41 = por %p39, %p40
      %p42 = scmp.ne.s32.totalorder %s31, %s32
      %p43 = scmp.eq.s32.totalorder %s23, 0
      %p44 = por %p42, %p43
      %p45 = scmp.ne.s32.totalorder %s31, %s32
      %p46 = scmp.eq.s32.totalorder %s24, 1
      %p47 = por %p45, %p46
      %p49 = scmp.ne.s32.totalorder %s32, %s48
      %p50 = scmp.eq.s32.totalorder %s24, 0
      %p51 = por %p49, %p50
      %s53 = sadd.s32 %s52, 1
      %p56 = scmp.eq.s32.totalorder %s18, 1
      %p57 = scmp.ne.s32.totalorder %s52, %s54
      %p58 = scmp.eq.s32.totalorder %s18, 0
      %p59 = por %p57, %p58
      %p60 = scmp.ne.s32.totalorder %s52, %s54
      %p61 = scmp.eq.s32.totalorder %s23, 1
      %p62 = por %p60, %p61
      %p63 = scmp.ne.s32.totalorder %s54, %s55
      %p64 = scmp.eq.s32.totalorder %s23, 0
      %p65 = por %p63, %p64
      %p66 = scmp.ne.s32.totalorder %s54, %s55
      %p67 = scmp.eq.s32.totalorder %s24, 1
      %p68 = por %p66, %p67
      %p70 = scmp.ne.s32.totalorder %s55, %s69
      %p71 = scmp.eq.s32.totalorder %s24, 0
      %p72 = por %p70, %p71
      %s74 = sadd.s32 %s73, 1
      %p77 = scmp.eq.s32.totalorder %s18, 1
      %p78 = scmp.ne.s32.totalorder %s73, %s75
      %p79 = scmp.eq.s32.totalorder %s18, 0
      %p80 = por %p78, %p79
      %p81 = scmp.ne.s32.totalorder %s73, %s75
      %p82 = scmp.eq.s32.totalorder %s23, 1
      %p83 = por %p81, %p82
      %p84 = scmp.ne.s32.totalorder %s75, %s76
      %p85 = scmp.eq.s32.totalorder %s23, 0
      %p86 = por %p84, %p85
      %p87 = scmp.ne.s32.totalorder %s75, %s76
      %p88 = scmp.eq.s32.totalorder %s24, 1
      %p89 = por %p87, %p88
      %p91 = scmp.ne.s32.totalorder %s76, %s90
      %p92 = scmp.eq.s32.totalorder %s24, 0
      %p93 = por %p91, %p92
      %s95 = sadd.s32 %s94, 1
      %p98 = scmp.eq.s32.totalorder %s18, 1
      %p99 = scmp.ne.s32.totalorder %s94, %s96
      %p100 = scmp.eq.s32.totalorder %s18, 0
      %p101 = por %p99, %p100
      %p102 = scmp.ne.s32.totalorder %s94, %s96
      %p103 = scmp.eq.s32.totalorder %s23, 1
      %p104 = por %p102, %p103
      %p105 = scmp.ne.s32.totalorder %s96, %s97
      %p106 = scmp.eq.s32.totalorder %s23, 0
      %p107 = por %p105, %p106
      %p108 = scmp.ne.s32.totalorder %s96, %s97
      %p109 = scmp.eq.s32.totalorder %s24, 1
      %p110 = por %p108, %p109
      %p112 = scmp.ne.s32.totalorder %s97, %s111
      %p113 = scmp.eq.s32.totalorder %s24, 0
      %p114 = por %p112, %p113
      %s116 = sadd.s32 %s115, 1
      %p119 = scmp.eq.s32.totalorder %s18, 1
      %p120 = scmp.ne.s32.totalorder %s115, %s117
      %p121 = scmp.eq.s32.totalorder %s18, 0
      %p122 = por %p120, %p121
      %p123 = scmp.ne.s32.totalorder %s115, %s117
      %p124 = scmp.eq.s32.totalorder %s23, 1
      %p125 = por %p123, %p124
      %p126 = scmp.ne.s32.totalorder %s117, %s118
      %p127 = scmp.eq.s32.totalorder %s23, 0
      %p128 = por %p126, %p127
      %p129 = scmp.ne.s32.totalorder %s117, %s118
      %p130 = scmp.eq.s32.totalorder %s24, 1
      %p131 = por %p129, %p130
      %p133 = scmp.ne.s32.totalorder %s118, %s132
      %p134 = scmp.eq.s32.totalorder %s24, 0
      %p135 = por %p133, %p134
      %s137 = sadd.s32 %s136, 1
      %p140 = scmp.eq.s32.totalorder %s18, 1
      %p141 = scmp.ne.s32.totalorder %s136, %s138
      %p142 = scmp.eq.s32.totalorder %s18, 0
      %p143 = por %p141, %p142
      %p144 = scmp.ne.s32.totalorder %s136, %s138
      %p145 = scmp.eq.s32.totalorder %s23, 1
      %p146 = por %p144, %p145
      %p147 = scmp.ne.s32.totalorder %s138, %s139
      %p148 = scmp.eq.s32.totalorder %s23, 0
      %p149 = por %p147, %p148
      %p150 = scmp.ne.s32.totalorder %s138, %s139
      %p151 = scmp.eq.s32.totalorder %s24, 1
      %p152 = por %p150, %p151
      %p154 = scmp.ne.s32.totalorder %s139, %s153
      %p155 = scmp.eq.s32.totalorder %s24, 0
      %p156 = por %p154, %p155
      %s157 = ssub.s32 %s18, %s25
      %p158 = scmp.eq.s32.totalorder %s157, 0
      %s160 = sadd.s32 %s159, 1
      %s161 = scalar_select %p158, %s159, %s160
      %p164 = pneg %p158
      %p165 = scmp.eq.s32.totalorder %s18, 1
      %p166 = por %p164, %p165
      %p167 = scmp.ne.s32.totalorder %s159, %s162
      %p168 = scmp.eq.s32.totalorder %s18, 0
      %p169 = por %p167, %p168
      %p170 = scmp.ne.s32.totalorder %s159, %s162
      %p171 = scmp.eq.s32.totalorder %s23, 1
      %p172 = por %p170, %p171
      %p173 = scmp.ne.s32.totalorder %s162, %s163
      %p174 = scmp.eq.s32.totalorder %s23, 0
      %p175 = por %p173, %p174
      %p176 = scmp.ne.s32.totalorder %s162, %s163
      %p177 = scmp.eq.s32.totalorder %s24, 1
      %p178 = por %p176, %p177
      %p180 = scmp.ne.s32.totalorder %s163, %s179
      %p181 = scmp.eq.s32.totalorder %s24, 0
      %p182 = por %p180, %p181
      %p183 = scmp.le.s32.totalorder 1, %s18
      %p184 = scmp.lt.s32.totalorder %s18, 3
      %p185 = pnand %p183, %p184
      %p186 = pneg %p185
      // Predicated region
      $region9: #{tpu_custom_call.1} parent=5 // pred_check
        _
      $region10: #{tpu_custom_call.1} parent=5 // pred_check_branch
        %188 = sbr.rel (%p185) target = $region12
      $region11: #{tpu_custom_call.1} parent=5 // pred_region
        %s189 = ssub.s32 %s18, 1
        // Predicated region
        $region13: #{tpu_custom_call.1} parent=11 // pred_check
          %p190 = pneg %p65
        $region14: #{tpu_custom_call.1} parent=11 // pred_check_branch
          %192 = sbr.rel (%p190) target = $region16
        $region15: #{tpu_custom_call.1} parent=11 // pred_region
          _
        $region16: #{tpu_custom_call.1} parent=11 // pred_fallthru
          _
        // Predicated region
        $region17: #{tpu_custom_call.1} parent=11 // pred_check
          %p193 = pneg %p86
        $region18: #{tpu_custom_call.1} parent=11 // pred_check_branch
          %195 = sbr.rel (%p193) target = $region20
        $region19: #{tpu_custom_call.1} parent=11 // pred_region
          _
        $region20: #{tpu_custom_call.1} parent=11 // pred_fallthru
          _
        // Predicated region
        $region21: #{tpu_custom_call.1} parent=11 // pred_check
          %p196 = pneg %p107
        $region22: #{tpu_custom_call.1} parent=11 // pred_check_branch
          %198 = sbr.rel (%p196) target = $region24
        $region23: #{tpu_custom_call.1} parent=11 // pred_region
          _
        $region24: #{tpu_custom_call.1} parent=11 // pred_fallthru
          _
        // Predicated region
        $region25: #{tpu_custom_call.1} parent=11 // pred_check
          %p199 = pneg %p128
        $region26: #{tpu_custom_call.1} parent=11 // pred_check_branch
          %201 = sbr.rel (%p199) target = $region28
        $region27: #{tpu_custom_call.1} parent=11 // pred_region
          _
        $region28: #{tpu_custom_call.1} parent=11 // pred_fallthru
          _
        // Predicated region
        $region29: #{tpu_custom_call.1} parent=11 // pred_check
          %p202 = pneg %p149
        $region30: #{tpu_custom_call.1} parent=11 // pred_check_branch
          %204 = sbr.rel (%p202) target = $region32
        $region31: #{tpu_custom_call.1} parent=11 // pred_region
          _
        $region32: #{tpu_custom_call.1} parent=11 // pred_fallthru
          _
      $region12: #{tpu_custom_call.1} parent=5 // pred_fallthru
        _
      %p205 = scmp.lt.s32.totalorder %s18, 2
      // Predicated region
      $region33: #{tpu_custom_call.1} parent=5 // pred_check
        %p206 = pneg %p205
      $region34: #{tpu_custom_call.1} parent=5 // pred_check_branch
        %208 = sbr.rel (%p206) target = $region36
      $region35: #{tpu_custom_call.1} parent=5 // pred_region
        // Predicated region
        $region37: #{tpu_custom_call.1} parent=35 // pred_check
          %p209 = pneg %p38
        $region38: #{tpu_custom_call.1} parent=35 // pred_check_branch
          %211 = sbr.rel (%p209) target = $region40
        $region39: #{tpu_custom_call.1} parent=35 // pred_region
          %s212 = sand.u32 %s28, 1
          %s213 = scalar_lea.sflag [#allocation4], %s212
          %s214 = sand.u32 %s28, 1
          %s215 = smul.addr %s214, 6
          %s216 = scalar_lea.vmem [#allocation3], %s215
          %s218 = ssub.s32 96, 96
          %219 = vsyncadd %s213, %s218
          %s220 = smul.addr %s18, 3
          %s221 = smul.addr %s220, 32
          %s222 = scalar_lea.hbm %s0, %s221
          %s224 = sshll.u32 %s216, 4
          %s225 = int_to_ptr.vmem [resolvable:$true] %s224
          %227 = dma.hbm_to_vmem [thread:$0]  %s222, 96, %s225, %s213
        $region40: #{tpu_custom_call.1} parent=35 // pred_fallthru
          _
      $region36: #{tpu_custom_call.1} parent=5 // pred_fallthru
        _
      %p228 = scmp.le.s32.totalorder 1, %s18
      %p229 = scmp.lt.s32.totalorder %s18, 3
      %p230 = pnand %p228, %p229
      %p231 = pneg %p230
      // Predicated region
      $region41: #{tpu_custom_call.1} parent=5 // pred_check
        _
      $region42: #{tpu_custom_call.1} parent=5 // pred_check_branch
        %233 = sbr.rel (%p230) target = $region44
      $region43: #{tpu_custom_call.1} parent=5 // pred_region
        %s234 = ssub.s32 %s18, 1
        %s235 = sand.u32 %s31, 1
        %s236 = scalar_lea.sflag [#allocation4], %s235
        %s237 = sand.u32 %s31, 1
        %s238 = smul.addr %s237, 6
        %s239 = scalar_lea.vmem [#allocation3], %s238
        // Predicated region
        $region45: #{tpu_custom_call.1} parent=43 // pred_check
          %p240 = pneg %p44
        $region46: #{tpu_custom_call.1} parent=43 // pred_check_branch
          %242 = sbr.rel (%p240) target = $region48
        $region47: #{tpu_custom_call.1} parent=43 // pred_region
          %243 = dma.done %s236, 96
        $region48: #{tpu_custom_call.1} parent=43 // pred_fallthru
          _
        %s244 = sand.u32 %s31, 1
        %s245 = scalar_lea.sflag [#allocation4], %s244
        %s246 = sand.u32 %s31, 1
        %s247 = smul.addr %s246, 6
        %s248 = scalar_lea.vmem [#allocation3], %s247
        %p249 = pneg %p44
        %p250 = pneg %p41
        %p251 = pneg %p65
        %p252 = pneg %p62
        %p253 = pneg %p86
        %p254 = pneg %p83
        %p255 = pneg %p107
        %p256 = pneg %p104
        %p257 = pneg %p128
        %p258 = pneg %p125
        %p259 = pneg %p149
        %p260 = pneg %p146
        %p261 = pneg %p175
        %p262 = pneg %p172
        %s263 = sand.u32 %s162, 1
        %s264 = scalar_lea.sflag [#allocation5], %s263
        %s265 = sand.u32 %s162, 1
        %s266 = smul.addr %s265, 6
        %s267 = scalar_lea.vmem [#allocation6], %s266
        %vm269 = vcmask 148480
        %270 = vst.msk [vmem:[#allocation2] sm:$0x3] %vm269, 0
        %vm271 = vcmask 1041560
        %272 = vst.msk [vmem:[#allocation2 + $0x6] sm:$0x3] %vm271, 0
        %v273 = vld [vmem:[%s239] sm:$0x3f]
        %275 = vrot.lane.b32.xlu0 %v273, 19
        %v276 = vpop.permute.xlu0 %275
        %v277 = vrot.slane %v276, 6
        %vm278 = vcmask 154624
        %v279 = vsel %vm278, %v277, %v276
        %vm281 = vcmask 1043458
        %vm282 = vmor %vm281, %vm271
        %vm283 = vcmask 1045508
        %vm284 = vmor %vm283, %vm282
        %vm285 = vcmask 154630
        %vm286 = vmor %vm285, %vm284
        %287 = vst.msk [vmem:[#allocation2] sm:$0xff] %vm286, %v279
        %v288 = vld [vmem:[%s1] sm:$0x7]
        %v289 = vld [vmem:[#allocation2] sm:$0x3f]
        %v290 = vld [vmem:[#allocation2] sm:$0xff]
        %v292 = vcombine.high %v289, %v289
        %v294 = vunpack.c.l.s4 1983009808
        %v295 = vunpack.c.0.s8 %v294
        %v296 = vlaneseq
        %v297 = vshrl.u32 %v296, 7
        %v298 = vsub.s32 %v295, %v297
        %v299 = vrot.slane %v289, %v298
        %v301 = vunpack.c.l.s4 1983009808
        %v302 = vunpack.c.0.s8 %v301
        %v303 = vlaneseq
        %v304 = vshrl.u32 %v303, 7
        %v305 = vsub.s32 %v302, %v304
        %v306 = vrot.slane %v292, %v305
        %v307 = vcombine.high %v299, %v299
        %v309 = vcombine.low %v290, %v290
        %v311 = vunpack.c.l.s4 1983009808
        %v312 = vunpack.c.0.s8 %v311
        %v313 = vlaneseq
        %v314 = vshrl.u32 %v313, 7
        %v315 = vsub.s32 %v312, %v314
        %v316 = vrot.slane %v309, %v315
        %v318 = vunpack.c.l.s4 1983009808
        %v319 = vunpack.c.0.s8 %v318
        %v320 = vlaneseq
        %v321 = vshrl.u32 %v320, 7
        %v322 = vsub.s32 %v319, %v321
        %v323 = vrot.slane %v290, %v322
        %v324 = vcombine.high %v316, %v316
        %v325 = vcombine.high %v323, %v323
        %326 = vrot.lane.b32.xlu0 %v316, 127
        %v327 = vpop.permute.xlu0 %326
        %328 = vrot.lane.b32.xlu0 %v324, 127
        %v329 = vpop.permute.xlu0 %328
        %330 = vrot.lane.b32.xlu0 %v323, 127
        %v331 = vpop.permute.xlu0 %330
        %332 = vrot.lane.b32.xlu0 %v325, 127
        %v333 = vpop.permute.xlu0 %332
        %vm334 = vcmask 1039360
        %v335 = vsel %vm334, %v327, %v329
        %v336 = vsel %vm334, %v329, %v331
        %v337 = vsel %vm334, %v331, %v333
        %v338 = vcombine.high %v290, %v290
        %v340 = vunpack.c.l.s4 1983009808
        %v341 = vunpack.c.0.s8 %v340
        %v342 = vlaneseq
        %v343 = vshrl.u32 %v342, 7
        %v344 = vsub.s32 %v341, %v343
        %v345 = vrot.slane %v338, %v344
        %v346 = vcombine.low %v323, %v323
        %v347 = vcombine.low %v345, %v345
        %348 = vrot.lane.b32.xlu0 %v346, 126
        %v349 = vpop.permute.xlu0 %348
        %350 = vrot.lane.b32.xlu0 %v323, 126
        %v351 = vpop.permute.xlu0 %350
        %352 = vrot.lane.b32.xlu0 %v347, 126
        %v353 = vpop.permute.xlu0 %352
        %354 = vrot.lane.b32.xlu0 %v345, 126
        %v355 = vpop.permute.xlu0 %354
        %vm356 = vcmask 1031168
        %v357 = vsel %vm356, %v349, %v351
        %v358 = vsel %vm356, %v351, %v353
        %v359 = vsel %vm356, %v353, %v355
        %v360 = vcombine.low %v316, %v316
        %361 = vrot.lane.b32.xlu0 %v360, 110
        %v362 = vpop.permute.xlu0 %361
        %363 = vrot.lane.b32.xlu0 %v316, 110
        %v364 = vpop.permute.xlu0 %363
        %365 = vrot.lane.b32.xlu0 %v346, 110
        %v366 = vpop.permute.xlu0 %365
        %367 = vrot.lane.b32.xlu0 %v323, 110
        %v368 = vpop.permute.xlu0 %367
        %vm369 = vcmask 900096
        %v370 = vsel %vm369, %v362, %v364
        %v371 = vsel %vm369, %v364, %v366
        %v372 = vsel %vm369, %v366, %v368
        %v373 = vcombine.high %v345, %v345
        %374 = vrot.lane.b32.xlu0 %v323, 109
        %v375 = vpop.permute.xlu0 %374
        %376 = vrot.lane.b32.xlu0 %v325, 109
        %v377 = vpop.permute.xlu0 %376
        %378 = vrot.lane.b32.xlu0 %v345, 109
        %v379 = vpop.permute.xlu0 %378
        %380 = vrot.lane.b32.xlu0 %v373, 109
        %v381 = vpop.permute.xlu0 %380
        %vm382 = vcmask 891904
        %v383 = vsel %vm382, %v375, %v377
        %v384 = vsel %vm382, %v377, %v379
        %v385 = vsel %vm382, %v379, %v381
        %386 = vrot.lane.b32.xlu0 %v316, 108
        %v387 = vpop.permute.xlu0 %386
        %388 = vrot.lane.b32.xlu0 %v324, 108
        %v389 = vpop.permute.xlu0 %388
        %390 = vrot.lane.b32.xlu0 %v323, 108
        %v391 = vpop.permute.xlu0 %390
        %392 = vrot.lane.b32.xlu0 %v325, 108
        %v393 = vpop.permute.xlu0 %392
        %vm394 = vcmask 883712
        %v395 = vsel %vm394, %v387, %v389
        %v396 = vsel %vm394, %v389, %v391
        %v397 = vsel %vm394, %v391, %v393
        %398 = vrot.lane.b32.xlu0 %v346, 92
        %v399 = vpop.permute.xlu0 %398
        %400 = vrot.lane.b32.xlu0 %v323, 92
        %v401 = vpop.permute.xlu0 %400
        %402 = vrot.lane.b32.xlu0 %v347, 92
        %v403 = vpop.permute.xlu0 %402
        %404 = vrot.lane.b32.xlu0 %v345, 92
        %v405 = vpop.permute.xlu0 %404
        %vm406 = vcmask 752640
        %v407 = vsel %vm406, %v399, %v401
        %v408 = vsel %vm406, %v401, %v403
        %v409 = vsel %vm406, %v403, %v405
        %410 = vrot.lane.b32.xlu0 %v360, 91
        %v411 = vpop.permute.xlu0 %410
        %412 = vrot.lane.b32.xlu0 %v316, 91
        %v413 = vpop.permute.xlu0 %412
        %414 = vrot.lane.b32.xlu0 %v346, 91
        %v415 = vpop.permute.xlu0 %414
        %416 = vrot.lane.b32.xlu0 %v323, 91
        %v417 = vpop.permute.xlu0 %416
        %vm418 = vcmask 744448
        %v419 = vsel %vm418, %v411, %v413
        %v420 = vsel %vm418, %v413, %v415
        %v421 = vsel %vm418, %v415, %v417
        %422 = vrot.lane.b32.xlu0 %v323, 90
        %v423 = vpop.permute.xlu0 %422
        %424 = vrot.lane.b32.xlu0 %v325, 90
        %v425 = vpop.permute.xlu0 %424
        %426 = vrot.lane.b32.xlu0 %v345, 90
        %v427 = vpop.permute.xlu0 %426
        %428 = vrot.lane.b32.xlu0 %v373, 90
        %v429 = vpop.permute.xlu0 %428
        %vm430 = vcmask 736256
        %v431 = vsel %vm430, %v423, %v425
        %v432 = vsel %vm430, %v425, %v427
        %v433 = vsel %vm430, %v427, %v429
        %vm434 = vcmask 1041408
        %v437 = vsel %vm434, %v299, %v335
        %v440 = vsel %vm434, %v307, %v336
        %v443 = vsel %vm434, %v306, %v337
        %vm444 = vcmask 1043456
        %v446 = vsel %vm444, %v437, %v357
        %v448 = vsel %vm444, %v440, %v358
        %v450 = vsel %vm444, %v443, %v359
        %vm451 = vcmask 1045504
        %v453 = vsel %vm451, %v446, %v370
        %v456 = vsel %vm451, %v448, %v371
        %v459 = vsel %vm451, %v450, %v372
        %v463 = vsel %vm434, %v383, %v395
        %v466 = vsel %vm434, %v384, %v396
        %v469 = vsel %vm434, %v385, %v397
        %v471 = vsel %vm444, %v463, %v407
        %v473 = vsel %vm444, %v466, %v408
        %v475 = vsel %vm444, %v469, %v409
        %v477 = vsel %vm451, %v471, %v419
        %v480 = vsel %vm451, %v473, %v420
        %v483 = vsel %vm451, %v475, %v421
        %v485 = vld [vmem:[%s2] sm:$0x3]
        %v486 = vld [vmem:[%s3] sm:$0xf]
        %488 = vset.pattern.permute.xlu0 0
        %489 = vperm.xlu0 %488, %v486
        %v490 = vpop.permute.xlu0 %489
        %vm492 = vcmask 293888
        %v494 = vsel %vm492, %v485, 0
        %v497 = vsel %vm434, %v431, 0
        %v500 = vsel %vm434, %v432, 0
        %v503 = vsel %vm434, %v433, 0
        %505 = vmatprep.subr.bf16.mxu0 %v456
        %506 = vmatpush1.bf16.msra.mxu0 %v453
        %507 = vmatprep.subr.bf16.mxu0 %v480
        %508 = vmatpush1.bf16.msra.mxu0 %v477
        %509 = vmatprep.subr.bf16.mxu0 %v500
        %510 = vmatpush1.bf16.msra.mxu0 %v497
        %511 = vmatprep.subr.bf16.mxu0 0
        %512 = vmatpush1.bf16.msra.mxu0 0
        %513 = vmatprep.subr.bf16.mxu0 0
        %514 = vmatpush1.bf16.msra.mxu0 0
        %515 = vmatprep.subr.bf16.mxu0 0
        %516 = vmatpush1.bf16.msra.mxu0 0
        %517 = vmatprep.subr.bf16.mxu0 0
        %518 = vmatpush1.bf16.msra.mxu0 0
        %519 = vmatprep.subr.bf16.mxu0 0
        %520 = vmatpush1.bf16.msra.mxu0 0
        %521 = vmatprep.subr.bf16.mxu0 0
        %522 = vmatpush1.bf16.msra.mxu0 0
        %523 = vmatprep.subr.bf16.mxu0 0
        %524 = vmatpush1.bf16.msra.mxu0 0
        %525 = vmatprep.subr.bf16.mxu0 0
        %526 = vmatpush1.bf16.msra.mxu0 0
        %527 = vmatprep.subr.bf16.mxu0 0
        %528 = vmatpush1.bf16.msra.mxu0 0
        %529 = vmatprep.subr.bf16.mxu0 0
        %530 = vmatpush1.bf16.msra.mxu0 0
        %531 = vmatprep.subr.bf16.mxu0 0
        %532 = vmatpush1.bf16.msra.mxu0 0
        %533 = vmatprep.subr.bf16.mxu0 0
        %534 = vmatpush1.bf16.msra.mxu0 0
        %535 = vmatprep.subr.bf16.mxu0 0
        %536 = vmatpush1.bf16.msra.mxu0 0
        %537 = vmatprep.mubr.bf16.mxu0 0
        %538 = vmatmul.mubr.bf16.gmra.mrb[0].mxu0 %v494
        %v539 = vpop.f32.mrb[0].mxu0
        %v540 = vadd.f32 %v490, %v539
        %v541 = vpop.f32.mrb[0].mxu0
        %v542 = vadd.f32 %v490, %v541
        %v543 = vpop.f32.mrb[0].mxu0
        %v544 = vpop.f32.mrb[0].mxu0
        %545 = vdwg.mxu0
        %546 = vmatprep.subr.bf16.mxu0 0
        %547 = vmatpush1.bf16.msra.mxu0 %v459
        %548 = vmatprep.subr.bf16.mxu0 0
        %549 = vmatpush1.bf16.msra.mxu0 %v483
        %550 = vmatprep.subr.bf16.mxu0 0
        %551 = vmatpush1.bf16.msra.mxu0 %v503
        %552 = vmatprep.subr.bf16.mxu0 0
        %553 = vmatpush1.bf16.msra.mxu0 0
        %554 = vmatprep.subr.bf16.mxu0 0
        %555 = vmatpush1.bf16.msra.mxu0 0
        %556 = vmatprep.subr.bf16.mxu0 0
        %557 = vmatpush1.bf16.msra.mxu0 0
        %558 = vmatprep.subr.bf16.mxu0 0
        %559 = vmatpush1.bf16.msra.mxu0 0
        %560 = vmatprep.subr.bf16.mxu0 0
        %561 = vmatpush1.bf16.msra.mxu0 0
        %562 = vmatprep.subr.bf16.mxu0 0
        %563 = vmatpush1.bf16.msra.mxu0 0
        %564 = vmatprep.subr.bf16.mxu0 0
        %565 = vmatpush1.bf16.msra.mxu0 0
        %566 = vmatprep.subr.bf16.mxu0 0
        %567 = vmatpush1.bf16.msra.mxu0 0
        %568 = vmatprep.subr.bf16.mxu0 0
        %569 = vmatpush1.bf16.msra.mxu0 0
        %570 = vmatprep.subr.bf16.mxu0 0
        %571 = vmatpush1.bf16.msra.mxu0 0
        %572 = vmatprep.subr.bf16.mxu0 0
        %573 = vmatpush1.bf16.msra.mxu0 0
        %574 = vmatprep.subr.bf16.mxu0 0
        %575 = vmatpush1.bf16.msra.mxu0 0
        %576 = vmatprep.subr.bf16.mxu0 0
        %577 = vmatpush1.bf16.msra.mxu0 0
        %578 = vmatprep.mubr.bf16.mxu0 0
        %579 = vmatmul.mubr.bf16.gmra.mrb[0].mxu0 %v494
        %v580 = vpop.f32.mrb[0].mxu0
        %v581 = vadd.f32 %v490, %v580
        %v582 = vpop.f32.mrb[0].mxu0
        %v583 = vpop.f32.mrb[0].mxu0
        %v584 = vpop.f32.mrb[0].mxu0
        %585 = vdwg.mxu0
        %v586 = vmax.f32 %v540, 0.0
        %v587 = vmax.f32 %v542, 0.0
        %v588 = vmax.f32 %v581, 0.0
        %v590 = vlaneseq
        %v591 = vshrl.u32 %v590, 7
        %v592 = vsub.s32 0, %v591
        %v593 = vrot.slane %v288, %v592
        %v594 = vlaneseq
        %v595 = vshrl.u32 %v594, 7
        %v596 = vsub.s32 1, %v595
        %v597 = vrot.slane %v288, %v596
        %v598 = vlaneseq
        %v599 = vshrl.u32 %v598, 7
        %v600 = vsub.s32 2, %v599
        %v601 = vrot.slane %v288, %v600
        %v605 = vmul.f32 %v586, %v593
        %v606 = vmul.f32 %v587, %v597
        %v607 = vmul.f32 %v588, %v601
        %v608 = vpack.c.bf16 %v605, %v605
        %v609 = vpack.c.bf16 %v606, %v606
        %v610 = vpack.c.bf16 %v607, %v607
        %v614 = vcombine.low %v608, %v609
        %v616 = vunpack.c.l.s4 1983009808
        %v617 = vunpack.c.0.s8 %v616
        %v618 = vlaneseq
        %v619 = vshrl.u32 %v618, 7
        %v620 = vsub.s32 %v617, %v619
        %v621 = vrot.slane %v614, %v620
        %v623 = vunpack.c.l.s4 1983009808
        %v624 = vunpack.c.0.s8 %v623
        %v625 = vlaneseq
        %v626 = vshrl.u32 %v625, 7
        %v627 = vsub.s32 %v624, %v626
        %v628 = vrot.slane %v610, %v627
        %v629 = vcombine.low %v621, %v628
        %630 = vrot.lane.b32.xlu0 %v629, 19
        %v631 = vpop.permute.xlu0 %630
        %v632 = vrot.slane %v631, 6
        %v633 = vsel %vm278, %v632, %v631
        %635 = vst.msk [vmem:[#allocation2] sm:$0xff] %vm286, %v633
        %v636 = vld [vmem:[%s239] sm:$0x3f]
        %v637 = vunpack.c.l.bf16 %v636
        %v638 = vunpack.c.h.bf16 %v636
        %v639 = vld [vmem:[#allocation2] sm:$0x3f]
        %v640 = vld [vmem:[#allocation2] sm:$0xff]
        %v642 = vcombine.high %v639, %v639
        %v644 = vunpack.c.l.s4 1983009808
        %v645 = vunpack.c.0.s8 %v644
        %v646 = vlaneseq
        %v647 = vshrl.u32 %v646, 7
        %v648 = vsub.s32 %v645, %v647
        %v649 = vrot.slane %v639, %v648
        %v651 = vunpack.c.l.s4 1983009808
        %v652 = vunpack.c.0.s8 %v651
        %v653 = vlaneseq
        %v654 = vshrl.u32 %v653, 7
        %v655 = vsub.s32 %v652, %v654
        %v656 = vrot.slane %v642, %v655
        %v657 = vcombine.high %v649, %v649
        %v659 = vcombine.low %v640, %v640
        %v661 = vunpack.c.l.s4 1983009808
        %v662 = vunpack.c.0.s8 %v661
        %v663 = vlaneseq
        %v664 = vshrl.u32 %v663, 7
        %v665 = vsub.s32 %v662, %v664
        %v666 = vrot.slane %v659, %v665
        %v668 = vunpack.c.l.s4 1983009808
        %v669 = vunpack.c.0.s8 %v668
        %v670 = vlaneseq
        %v671 = vshrl.u32 %v670, 7
        %v672 = vsub.s32 %v669, %v671
        %v673 = vrot.slane %v640, %v672
        %v674 = vcombine.high %v666, %v666
        %v675 = vcombine.high %v673, %v673
        %676 = vrot.lane.b32.xlu0 %v666, 127
        %v677 = vpop.permute.xlu0 %676
        %678 = vrot.lane.b32.xlu0 %v674, 127
        %v679 = vpop.permute.xlu0 %678
        %680 = vrot.lane.b32.xlu0 %v673, 127
        %v681 = vpop.permute.xlu0 %680
        %682 = vrot.lane.b32.xlu0 %v675, 127
        %v683 = vpop.permute.xlu0 %682
        %v684 = vsel %vm334, %v677, %v679
        %v685 = vsel %vm334, %v679, %v681
        %v686 = vsel %vm334, %v681, %v683
        %v687 = vcombine.high %v640, %v640
        %v689 = vunpack.c.l.s4 1983009808
        %v690 = vunpack.c.0.s8 %v689
        %v691 = vlaneseq
        %v692 = vshrl.u32 %v691, 7
        %v693 = vsub.s32 %v690, %v692
        %v694 = vrot.slane %v687, %v693
        %v695 = vcombine.low %v673, %v673
        %v696 = vcombine.low %v694, %v694
        %697 = vrot.lane.b32.xlu0 %v695, 126
        %v698 = vpop.permute.xlu0 %697
        %699 = vrot.lane.b32.xlu0 %v673, 126
        %v700 = vpop.permute.xlu0 %699
        %701 = vrot.lane.b32.xlu0 %v696, 126
        %v702 = vpop.permute.xlu0 %701
        %703 = vrot.lane.b32.xlu0 %v694, 126
        %v704 = vpop.permute.xlu0 %703
        %v705 = vsel %vm356, %v698, %v700
        %v706 = vsel %vm356, %v700, %v702
        %v707 = vsel %vm356, %v702, %v704
        %v708 = vcombine.low %v666, %v666
        %709 = vrot.lane.b32.xlu0 %v708, 110
        %v710 = vpop.permute.xlu0 %709
        %711 = vrot.lane.b32.xlu0 %v666, 110
        %v712 = vpop.permute.xlu0 %711
        %713 = vrot.lane.b32.xlu0 %v695, 110
        %v714 = vpop.permute.xlu0 %713
        %715 = vrot.lane.b32.xlu0 %v673, 110
        %v716 = vpop.permute.xlu0 %715
        %v717 = vsel %vm369, %v710, %v712
        %v718 = vsel %vm369, %v712, %v714
        %v719 = vsel %vm369, %v714, %v716
        %v720 = vcombine.high %v694, %v694
        %721 = vrot.lane.b32.xlu0 %v673, 109
        %v722 = vpop.permute.xlu0 %721
        %723 = vrot.lane.b32.xlu0 %v675, 109
        %v724 = vpop.permute.xlu0 %723
        %725 = vrot.lane.b32.xlu0 %v694, 109
        %v726 = vpop.permute.xlu0 %725
        %727 = vrot.lane.b32.xlu0 %v720, 109
        %v728 = vpop.permute.xlu0 %727
        %v729 = vsel %vm382, %v722, %v724
        %v730 = vsel %vm382, %v724, %v726
        %v731 = vsel %vm382, %v726, %v728
        %732 = vrot.lane.b32.xlu0 %v666, 108
        %v733 = vpop.permute.xlu0 %732
        %734 = vrot.lane.b32.xlu0 %v674, 108
        %v735 = vpop.permute.xlu0 %734
        %736 = vrot.lane.b32.xlu0 %v673, 108
        %v737 = vpop.permute.xlu0 %736
        %738 = vrot.lane.b32.xlu0 %v675, 108
        %v739 = vpop.permute.xlu0 %738
        %v740 = vsel %vm394, %v733, %v735
        %v741 = vsel %vm394, %v735, %v737
        %v742 = vsel %vm394, %v737, %v739
        %743 = vrot.lane.b32.xlu0 %v695, 92
        %v744 = vpop.permute.xlu0 %743
        %745 = vrot.lane.b32.xlu0 %v673, 92
        %v746 = vpop.permute.xlu0 %745
        %747 = vrot.lane.b32.xlu0 %v696, 92
        %v748 = vpop.permute.xlu0 %747
        %749 = vrot.lane.b32.xlu0 %v694, 92
        %v750 = vpop.permute.xlu0 %749
        %v751 = vsel %vm406, %v744, %v746
        %v752 = vsel %vm406, %v746, %v748
        %v753 = vsel %vm406, %v748, %v750
        %754 = vrot.lane.b32.xlu0 %v708, 91
        %v755 = vpop.permute.xlu0 %754
        %756 = vrot.lane.b32.xlu0 %v666, 91
        %v757 = vpop.permute.xlu0 %756
        %758 = vrot.lane.b32.xlu0 %v695, 91
        %v759 = vpop.permute.xlu0 %758
        %760 = vrot.lane.b32.xlu0 %v673, 91
        %v761 = vpop.permute.xlu0 %760
        %v762 = vsel %vm418, %v755, %v757
        %v763 = vsel %vm418, %v757, %v759
        %v764 = vsel %vm418, %v759, %v761
        %765 = vrot.lane.b32.xlu0 %v673, 90
        %v766 = vpop.permute.xlu0 %765
        %767 = vrot.lane.b32.xlu0 %v675, 90
        %v768 = vpop.permute.xlu0 %767
        %769 = vrot.lane.b32.xlu0 %v694, 90
        %v770 = vpop.permute.xlu0 %769
        %771 = vrot.lane.b32.xlu0 %v720, 90
        %v772 = vpop.permute.xlu0 %771
        %v773 = vsel %vm430, %v766, %v768
        %v774 = vsel %vm430, %v768, %v770
        %v775 = vsel %vm430, %v770, %v772
        %v778 = vsel %vm434, %v649, %v684
        %v781 = vsel %vm434, %v657, %v685
        %v784 = vsel %vm434, %v656, %v686
        %v786 = vsel %vm444, %v778, %v705
        %v788 = vsel %vm444, %v781, %v706
        %v790 = vsel %vm444, %v784, %v707
        %v792 = vsel %vm451, %v786, %v717
        %v795 = vsel %vm451, %v788, %v718
        %v798 = vsel %vm451, %v790, %v719
        %v802 = vsel %vm434, %v729, %v740
        %v805 = vsel %vm434, %v730, %v741
        %v808 = vsel %vm434, %v731, %v742
        %v810 = vsel %vm444, %v802, %v751
        %v812 = vsel %vm444, %v805, %v752
        %v814 = vsel %vm444, %v808, %v753
        %v816 = vsel %vm451, %v810, %v762
        %v819 = vsel %vm451, %v812, %v763
        %v822 = vsel %vm451, %v814, %v764
        %v824 = vld [vmem:[%s4] sm:$0x3]
        %v825 = vld [vmem:[%s5] sm:$0xf]
        %827 = vset.pattern.permute.xlu0 0
        %828 = vperm.xlu0 %827, %v825
        %v829 = vpop.permute.xlu0 %828
        %v832 = vsel %vm492, %v824, 0
        %v835 = vsel %vm434, %v773, 0
        %v838 = vsel %vm434, %v774, 0
        %v841 = vsel %vm434, %v775, 0
        %843 = vmatprep.subr.bf16.mxu0 %v795
        %844 = vmatpush1.bf16.msra.mxu0 %v792
        %845 = vmatprep.subr.bf16.mxu0 %v819
        %846 = vmatpush1.bf16.msra.mxu0 %v816
        %847 = vmatprep.subr.bf16.mxu0 %v838
        %848 = vmatpush1.bf16.msra.mxu0 %v835
        %849 = vmatprep.subr.bf16.mxu0 0
        %850 = vmatpush1.bf16.msra.mxu0 0
        %851 = vmatprep.subr.bf16.mxu0 0
        %852 = vmatpush1.bf16.msra.mxu0 0
        %853 = vmatprep.subr.bf16.mxu0 0
        %854 = vmatpush1.bf16.msra.mxu0 0
        %855 = vmatprep.subr.bf16.mxu0 0
        %856 = vmatpush1.bf16.msra.mxu0 0
        %857 = vmatprep.subr.bf16.mxu0 0
        %858 = vmatpush1.bf16.msra.mxu0 0
        %859 = vmatprep.subr.bf16.mxu0 0
        %860 = vmatpush1.bf16.msra.mxu0 0
        %861 = vmatprep.subr.bf16.mxu0 0
        %862 = vmatpush1.bf16.msra.mxu0 0
        %863 = vmatprep.subr.bf16.mxu0 0
        %864 = vmatpush1.bf16.msra.mxu0 0
        %865 = vmatprep.subr.bf16.mxu0 0
        %866 = vmatpush1.bf16.msra.mxu0 0
        %867 = vmatprep.subr.bf16.mxu0 0
        %868 = vmatpush1.bf16.msra.mxu0 0
        %869 = vmatprep.subr.bf16.mxu0 0
        %870 = vmatpush1.bf16.msra.mxu0 0
        %871 = vmatprep.subr.bf16.mxu0 0
        %872 = vmatpush1.bf16.msra.mxu0 0
        %873 = vmatprep.subr.bf16.mxu0 0
        %874 = vmatpush1.bf16.msra.mxu0 0
        %875 = vmatprep.mubr.bf16.mxu0 0
        %876 = vmatmul.mubr.bf16.gmra.mrb[0].mxu0 %v832
        %v877 = vpop.f32.mrb[0].mxu0
        %v878 = vadd.f32 %v829, %v877
        %v879 = vpop.f32.mrb[0].mxu0
        %v880 = vadd.f32 %v829, %v879
        %v881 = vpop.f32.mrb[0].mxu0
        %v882 = vpop.f32.mrb[0].mxu0
        %883 = vdwg.mxu0
        %884 = vmatprep.subr.bf16.mxu0 0
        %885 = vmatpush1.bf16.msra.mxu0 %v798
        %886 = vmatprep.subr.bf16.mxu0 0
        %887 = vmatpush1.bf16.msra.mxu0 %v822
        %888 = vmatprep.subr.bf16.mxu0 0
        %889 = vmatpush1.bf16.msra.mxu0 %v841
        %890 = vmatprep.subr.bf16.mxu0 0
        %891 = vmatpush1.bf16.msra.mxu0 0
        %892 = vmatprep.subr.bf16.mxu0 0
        %893 = vmatpush1.bf16.msra.mxu0 0
        %894 = vmatprep.subr.bf16.mxu0 0
        %895 = vmatpush1.bf16.msra.mxu0 0
        %896 = vmatprep.subr.bf16.mxu0 0
        %897 = vmatpush1.bf16.msra.mxu0 0
        %898 = vmatprep.subr.bf16.mxu0 0
        %899 = vmatpush1.bf16.msra.mxu0 0
        %900 = vmatprep.subr.bf16.mxu0 0
        %901 = vmatpush1.bf16.msra.mxu0 0
        %902 = vmatprep.subr.bf16.mxu0 0
        %903 = vmatpush1.bf16.msra.mxu0 0
        %904 = vmatprep.subr.bf16.mxu0 0
        %905 = vmatpush1.bf16.msra.mxu0 0
        %906 = vmatprep.subr.bf16.mxu0 0
        %907 = vmatpush1.bf16.msra.mxu0 0
        %908 = vmatprep.subr.bf16.mxu0 0
        %909 = vmatpush1.bf16.msra.mxu0 0
        %910 = vmatprep.subr.bf16.mxu0 0
        %911 = vmatpush1.bf16.msra.mxu0 0
        %912 = vmatprep.subr.bf16.mxu0 0
        %913 = vmatpush1.bf16.msra.mxu0 0
        %914 = vmatprep.subr.bf16.mxu0 0
        %915 = vmatpush1.bf16.msra.mxu0 0
        %916 = vmatprep.mubr.bf16.mxu0 0
        %917 = vmatmul.mubr.bf16.gmra.mrb[0].mxu0 %v832
        %v918 = vpop.f32.mrb[0].mxu0
        %v919 = vadd.f32 %v829, %v918
        %v920 = vpop.f32.mrb[0].mxu0
        %v921 = vpop.f32.mrb[0].mxu0
        %v922 = vpop.f32.mrb[0].mxu0
        %923 = vdwg.mxu0
        %v925 = vcombine.high %v637, %v637
        %v927 = vadd.f32 %v878, %v637
        %v928 = vadd.f32 %v880, %v925
        %v929 = vadd.f32 %v919, %v638
        %v930 = vmax.f32 %v927, 0.0
        %v931 = vmax.f32 %v928, 0.0
        %v932 = vmax.f32 %v929, 0.0
        %v933 = vmul.f32 %v930, %v593
        %v934 = vmul.f32 %v931, %v597
        %v935 = vmul.f32 %v932, %v601
        %v936 = vpack.c.bf16 %v933, %v933
        %v937 = vpack.c.bf16 %v934, %v934
        %v938 = vpack.c.bf16 %v935, %v935
        %v942 = vcombine.low %v936, %v937
        %v944 = vunpack.c.l.s4 1983009808
        %v945 = vunpack.c.0.s8 %v944
        %v946 = vlaneseq
        %v947 = vshrl.u32 %v946, 7
        %v948 = vsub.s32 %v945, %v947
        %v949 = vrot.slane %v942, %v948
        %v951 = vunpack.c.l.s4 1983009808
        %v952 = vunpack.c.0.s8 %v951
        %v953 = vlaneseq
        %v954 = vshrl.u32 %v953, 7
        %v955 = vsub.s32 %v952, %v954
        %v956 = vrot.slane %v938, %v955
        %v957 = vcombine.low %v949, %v956
        %959 = vst [vmem:[%s267] sm:$0x3f] %v957
        %s960 = sand.u32 %s162, 1
        %s961 = scalar_lea.sflag [#allocation5], %s960
        %s962 = sand.u32 %s162, 1
        %s963 = smul.addr %s962, 6
        %s964 = scalar_lea.vmem [#allocation6], %s963
        // Predicated region
        $region49: #{tpu_custom_call.1} parent=43 // pred_check
          %p965 = pneg %p172
        $region50: #{tpu_custom_call.1} parent=43 // pred_check_branch
          %967 = sbr.rel (%p965) target = $region52
        $region51: #{tpu_custom_call.1} parent=43 // pred_region
          %s969 = ssub.s32 96, 96
          %970 = vsyncadd %s961, %s969
          %s971 = smul.addr %s23, 3
          %s972 = smul.addr %s971, 32
          %s973 = scalar_lea.hbm %s6, %s972
          %s975 = sshll.u32 %s964, 4
          %s976 = int_to_ptr.vmem [resolvable:$true] %s975
          %978 = dma.vmem_to_hbm [thread:$0]  %s976, 96, %s973, %s961
        $region52: #{tpu_custom_call.1} parent=43 // pred_fallthru
          _
      $region44: #{tpu_custom_call.1} parent=5 // pred_fallthru
        _
      %p979 = scmp.le.s32.totalorder 2, %s18
      // Predicated region
      $region53: #{tpu_custom_call.1} parent=5 // pred_check
        %p980 = pneg %p979
      $region54: #{tpu_custom_call.1} parent=5 // pred_check_branch
        %982 = sbr.rel (%p980) target = $region56
      $region55: #{tpu_custom_call.1} parent=5 // pred_region
        %s983 = ssub.s32 %s18, 2
        // Predicated region
        $region57: #{tpu_custom_call.1} parent=55 // pred_check
          %p984 = pneg %p178
        $region58: #{tpu_custom_call.1} parent=55 // pred_check_branch
          %986 = sbr.rel (%p984) target = $region60
        $region59: #{tpu_custom_call.1} parent=55 // pred_region
          %s987 = sand.u32 %s163, 1
          %s988 = scalar_lea.sflag [#allocation5], %s987
          %s989 = sand.u32 %s163, 1
          %s990 = smul.addr %s989, 6
          %s991 = scalar_lea.vmem [#allocation6], %s990
          %992 = dma.done %s988, 96
        $region60: #{tpu_custom_call.1} parent=55 // pred_fallthru
          _
      $region56: #{tpu_custom_call.1} parent=5 // pred_fallthru
        _
    $region6: #{tpu_custom_call.1} parent=1 // loop_footer
      %s22 = sadd.s32 1, %s18
    $region7: #{tpu_custom_call.1} parent=1 // loop_footer_branch
      %17 = sbr.rel target = $region3
    $region8: #{tpu_custom_call.1} parent=1 // loop_exit
      _
    %993 = vsyncpa [#allocation4], 1
    %s994 = scalar_lea.sflag [#allocation4], 1
    %995 = vsyncpa %s994, 1
    %996 = vsyncpa [#allocation5], 1
    %s997 = scalar_lea.sflag [#allocation5], 1
    %998 = vsyncpa %s997, 1

</llo_original>
